<compile_context>
chip_gen: v6e
topology: v6e:2x2x1
jax: 0.10.0
libtpu: 0.0.40
codegen_flags: <defaults>
</compile_context>

<pallas_src>
import jax
import jax.numpy as jnp
import numpy as np
from jax.experimental import pallas as pl
from jax.experimental.pallas import tpu as pltpu


# --------------------------- VMEM budget helper ----------------------------- #
def _tile_padded_bytes(shape, dtype):
    """Approx VMEM footprint of an array incl. (sublane, 128-lane) tile padding."""
    item = np.dtype(dtype).itemsize
    rows = int(np.prod(shape[:-1])) if len(shape) > 1 else 1
    lanes = int(shape[-1])
    sublane = 8 * (4 // item)               # 8 rows/tile for 32-bit, 16 for 16-bit
    rows_p = -(-rows // sublane) * sublane
    lanes_p = -(-lanes // 128) * 128
    return rows_p * lanes_p * item


# ------------------------------ fused kernel -------------------------------- #
def double_conv_fused(x2, x1, params, *, matmul_dtype=jnp.float32):
    """Fused DoubleConv(concat([x2, x1], dim=1)) on NCHW inputs, equal spatial size."""
    N, C2, H, W = x2.shape
    C1 = x1.shape[1]
    Cin = C2 + C1
    Cmid = params["w1"].shape[-1]
    Cout = params["w2"].shape[-1]
    Hp, Wp = H + 2, W + 2
    L = N * Hp * Wp                    # flattened padded spatial -> lane axis
    MARGIN = 128                       # lane-aligned halo: shifted windows stay in-bounds
    Lm = L + 2 * MARGIN
    M = N * H * W                      # BatchNorm sample count (interior positions)
    inv_m = 1.0 / M
    eps = 1e-5
    # lane shift of tap (kh, kw) relative to the conv output position
    shifts = [(kh - 1) * Wp + (kw - 1) for kh in range(3) for kw in range(3)]

    # ---- wrapper-side layout plumbing (tiny XLA ops, all NCHW, no transposes
    #      of the activations through NHWC) ---------------------------------- #
    xcat = jnp.concatenate([x2, x1], axis=1)                     # torch.cat dim=1
    xcat = jnp.pad(xcat, ((0, 0), (0, 0), (1, 1), (1, 1)))       # conv halo
    slab = jnp.transpose(xcat, (1, 0, 2, 3)).reshape(Cin, L)     # (Cin, L) lane-major
    slab = jnp.pad(slab, ((0, 0), (MARGIN, MARGIN))).astype(matmul_dtype)

    # 1.0 at conv-output (interior) positions, 0.0 at halo positions
    mask = jnp.pad(jnp.ones((N, H, W), jnp.float32),
                   ((0, 0), (1, 1), (1, 1))).reshape(1, L)

    # weights flattened so each matmul is (C, K) @ (K, L); K row order is
    # tap-major then input channel, matching the pat build below.
    w1t = params["w1"].reshape(9 * Cin, Cmid).T.astype(matmul_dtype)   # (Cmid, 9*Cin)
    w2t = params["w2"].reshape(9 * Cmid, Cout).T.astype(matmul_dtype)  # (Cout, 9*Cmid)
    b1 = params["b1"].reshape(Cmid, 1)
    g1 = params["g1"].reshape(Cmid, 1)
    be1 = params["be1"].reshape(Cmid, 1)
    b2 = params["b2"].reshape(Cout, 1)
    g2 = params["g2"].reshape(Cout, 1)
    be2 = params["be2"].reshape(Cout, 1)

    # ---- VMEM budget incl. (8,128) layout padding; conservative single-block
    #      gate that also holds on v7x (64 MiB VMEM per TensorCore) ----------- #
    vmem_bytes = (
        _tile_padded_bytes((Cin, Lm), matmul_dtype)            # input slab
        + _tile_padded_bytes((1, L), jnp.float32)              # interior mask
        + _tile_padded_bytes((Cout, L), jnp.float32)           # output slab
        + _tile_padded_bytes((9 * Cin, L), matmul_dtype)       # im2col scratch 1
        + _tile_padded_bytes((Cmid, Lm), matmul_dtype)         # staged intermediate
        + _tile_padded_bytes((9 * Cmid, L), matmul_dtype)      # im2col scratch 2
        + 2 * _tile_padded_bytes((max(Cmid, Cout), L), jnp.float32))  # live acc values
    assert vmem_bytes < 24 * 1024 * 1024, (
        f"single-block DoubleConv needs ~{vmem_bytes / 2**20:.1f} MiB VMEM; "
        "switch to the row-tiled two-phase-BN variant (see TODO).")

    def kernel(slab_ref, mask_ref, w1t_ref, b1_ref, g1_ref, be1_ref,
               w2t_ref, b2_ref, g2_ref, be2_ref,
               o_ref, pat1_ref, h_ref, pat2_ref):
        msk = mask_ref[...]                                    # (1, L)

        def bn_lrelu(acc, g, be):
            # BatchNorm batch stats over the M interior positions only (biased
            # variance, eps=1e-5), centered two-pass form, then LeakyReLU(0.01).
            am = acc * msk
            mean = jnp.sum(am, axis=1, keepdims=True) * inv_m
            d = (acc - mean) * msk
            var = jnp.sum(d * d, axis=1, keepdims=True) * inv_m
            y = (acc - mean) * jax.lax.rsqrt(var + eps) * g + be
            return jnp.where(y > 0.0, y, 0.01 * y)

        # ---- conv1: 9 lane-shifted windows -> one K = 9*Cin matmul --------- #
        # Each window load is a static lane-offset slice (XLU rotate work) and
        # each pat store is Cin(=8)-sublane aligned and L-lane dense.
        for t, s in enumerate(shifts):
            pat1_ref[t * Cin:(t + 1) * Cin, :] = (
                slab_ref[:, MARGIN + s:MARGIN + s + L])
        acc1 = jnp.dot(w1t_ref[...], pat1_ref[...],
                       preferred_element_type=jnp.float32) + b1_ref[...]
        h = bn_lrelu(acc1, g1_ref[...], be1_ref[...]) * msk    # zero halo for conv2

        # ---- stage intermediate: aligned dense store, zero only the margins - #
        h_ref[:, 0:MARGIN] = jnp.zeros((Cmid, MARGIN), h_ref.dtype)
        h_ref[:, MARGIN + L:Lm] = jnp.zeros((Cmid, MARGIN), h_ref.dtype)
        h_ref[:, MARGIN:MARGIN + L] = h.astype(h_ref.dtype)

        # ---- conv2: 9 lane-shifted windows -> one K = 9*Cmid matmul -------- #
        for t, s in enumerate(shifts):
            pat2_ref[t * Cmid:(t + 1) * Cmid, :] = (
                h_ref[:, MARGIN + s:MARGIN + s + L])
        acc2 = jnp.dot(w2t_ref[...], pat2_ref[...],
                       preferred_element_type=jnp.float32) + b2_ref[...]
        o_ref[...] = bn_lrelu(acc2, g2_ref[...], be2_ref[...])

    vmem = pl.BlockSpec(memory_space=pltpu.MemorySpace.VMEM)
    out_slab = pl.pallas_call(
        kernel,
        out_shape=jax.ShapeDtypeStruct((Cout, L), jnp.float32),
        in_specs=[vmem] * 10,
        out_specs=vmem,
        scratch_shapes=[
            pltpu.VMEM((9 * Cin, L), matmul_dtype),    # im2col, layer 1
            pltpu.VMEM((Cmid, Lm), matmul_dtype),      # staged intermediate (+margins)
            pltpu.VMEM((9 * Cmid, L), matmul_dtype),   # im2col, layer 2
        ],
        compiler_params=pltpu.CompilerParams(
            vmem_limit_bytes=32 * 1024 * 1024),
    )(slab, mask, w1t, b1, g1, be1, w2t, b2, g2, be2)

    # interior extraction + NCHW: tiny post-op on the lane-dense output slab
    y = out_slab.reshape(Cout, N, Hp, Wp)[:, :, 1:Hp - 1, 1:Wp - 1]
    return jnp.transpose(y, (1, 0, 2, 3))


# ------------------------------ JAX glue ------------------------------------ #
def upsample_bilinear_x2_align_corners(x):
    """NCHW bilinear upsample by 2 with align_corners=True (PyTorch semantics)."""
    N, C, H, W = x.shape
    out_h, out_w = 2 * H, 2 * W

    def idx_weights(out_size, in_size):
        if in_size == 1:
            i0 = jnp.zeros((out_size,), jnp.int32)
            return i0, i0, jnp.ones((out_size,), jnp.float32), jnp.zeros(
                (out_size,), jnp.float32)
        src = jnp.arange(out_size, dtype=jnp.float32) * (
            (in_size - 1) / (out_size - 1))
        i0 = jnp.clip(jnp.floor(src).astype(jnp.int32), 0, in_size - 2)
        i1 = i0 + 1
        w1 = src - i0.astype(jnp.float32)
        return i0, i1, 1.0 - w1, w1

    y0, y1, wy0, wy1 = idx_weights(out_h, H)
    x0, x1, wx0, wx1 = idx_weights(out_w, W)
    rows = (x[:, :, y0, :] * wy0[None, None, :, None]
            + x[:, :, y1, :] * wy1[None, None, :, None])
    return (rows[:, :, :, x0] * wx0[None, None, None, :]
            + rows[:, :, :, x1] * wx1[None, None, None, :])


def _align_x1_to_x2(x1, x2):
    """PyTorch F.pad-style alignment; lax.pad handles negative (crop) amounts."""
    dy = x2.shape[2] - x1.shape[2]
    dx = x2.shape[3] - x1.shape[3]
    return jax.lax.pad(
        x1, jnp.array(0.0, x1.dtype),
        ((0, 0, 0), (0, 0, 0),
         (dy // 2, dy - dy // 2, 0),
         (dx // 2, dx - dx // 2, 0)))


def up_forward(x1_nchw, x2_nchw, params):
    x1 = upsample_bilinear_x2_align_corners(x1_nchw)
    x1 = _align_x1_to_x2(x1, x2_nchw)
    # concat([x2, x1], dim=1), conv halo pad and both conv/BN/LeakyReLU layers
    # are handled by the fused kernel path (output comes back in NCHW directly).
    return double_conv_fused(x2_nchw, x1, params)


# --------------------------- pure-JAX reference ------------------------------ #
def _ref_conv_bn_lrelu(x, w, b, g, beta):
    y = jax.lax.conv_general_dilated(
        x, w, window_strides=(1, 1), padding="SAME",
        dimension_numbers=("NHWC", "HWIO", "NHWC"),
        precision=jax.lax.Precision.HIGHEST) + b
    mean = jnp.mean(y, axis=(0, 1, 2), keepdims=True)
    var = jnp.mean((y - mean) ** 2, axis=(0, 1, 2), keepdims=True)
    y = (y - mean) * jax.lax.rsqrt(var + 1e-5) * g + beta
    return jnp.where(y > 0.0, y, 0.01 * y)


def up_forward_ref(x1_nchw, x2_nchw, params):
    x1 = upsample_bilinear_x2_align_corners(x1_nchw)
    x1 = _align_x1_to_x2(x1, x2_nchw)
    x = jnp.concatenate([x2_nchw, x1], axis=1)       # torch.cat([x2, x1], dim=1)
    x = jnp.transpose(x, (0, 2, 3, 1))               # NHWC for lax.conv
    h = _ref_conv_bn_lrelu(x, params["w1"], params["b1"],
                           params["g1"], params["be1"])
    y = _ref_conv_bn_lrelu(h, params["w2"], params["b2"],
                           params["g2"], params["be2"])
    return jnp.transpose(y, (0, 3, 1, 2))


# --------------------------------- main -------------------------------------- #
if __name__ == "__main__":
    key = jax.random.PRNGKey(0)
    k_x1, k_x2, k_w1, k_b1, k_w2, k_b2 = jax.random.split(key, 6)

    # Small UNet-like shapes: Up(in_channels=8, out_channels=4, bilinear=True)
    N = 2
    c1, c2 = 4, 4                  # channels of x1 (deep) and x2 (skip)
    H2 = W2 = 16                   # x2 spatial; x1 is half resolution
    in_ch = c1 + c2                # 8  (after concat)
    mid_ch = in_ch // 2            # 4  (DoubleConv mid_channels)
    out_ch = 4

    x1 = jax.random.normal(k_x1, (N, c1, H2 // 2, W2 // 2), jnp.float32)  # NCHW
    x2 = jax.random.normal(k_x2, (N, c2, H2, W2), jnp.float32)            # NCHW

    # Deterministic synthetic parameters (BN gamma=1, beta=0 as PyTorch default).
    params = dict(
        w1=jax.random.normal(k_w1, (3, 3, in_ch, mid_ch), jnp.float32) * 0.1,
        b1=jax.random.normal(k_b1, (mid_ch,), jnp.float32) * 0.05,
        g1=jnp.ones((mid_ch,), jnp.float32),
        be1=jnp.zeros((mid_ch,), jnp.float32),
        w2=jax.random.normal(k_w2, (3, 3, mid_ch, out_ch), jnp.float32) * 0.1,
        b2=jax.random.normal(k_b2, (out_ch,), jnp.float32) * 0.05,
        g2=jnp.ones((out_ch,), jnp.float32),
        be2=jnp.zeros((out_ch,), jnp.float32),
    )

    out = jax.block_until_ready(up_forward(x1, x2, params))
    ref = jax.block_until_ready(up_forward_ref(x1, x2, params))

    assert out.shape == (N, out_ch, H2, W2), out.shape
    np.testing.assert_allclose(np.asarray(out), np.asarray(ref),
                               rtol=1e-3, atol=1e-3)
    print("KERNEL_OK")
</pallas_src>

<mosaic_0001>
module attributes {stable_mosaic.version = 11 : i64} {
  func.func @kernel(%arg0: memref<8x904xf32, #tpu.memory_space<vmem>>, %arg1: memref<1x648xf32, #tpu.memory_space<vmem>>, %arg2: memref<4x72xf32, #tpu.memory_space<vmem>>, %arg3: memref<4x1xf32, #tpu.memory_space<vmem>>, %arg4: memref<4x1xf32, #tpu.memory_space<vmem>>, %arg5: memref<4x1xf32, #tpu.memory_space<vmem>>, %arg6: memref<4x36xf32, #tpu.memory_space<vmem>>, %arg7: memref<4x1xf32, #tpu.memory_space<vmem>>, %arg8: memref<4x1xf32, #tpu.memory_space<vmem>>, %arg9: memref<4x1xf32, #tpu.memory_space<vmem>>, %arg10: memref<4x648xf32, #tpu.memory_space<vmem>>, %arg11: memref<72x648xf32, #tpu.memory_space<vmem>>, %arg12: memref<4x904xf32, #tpu.memory_space<vmem>>, %arg13: memref<36x648xf32, #tpu.memory_space<vmem>>) attributes {dimension_semantics = [], scalar_prefetch = 0 : i64, scratch_operands = 3 : i64, tpu.core_type = #tpu.core_type<tc>} {
    %c0 = arith.constant 0 : index
    %c0_0 = arith.constant 0 : index
    %0 = vector.load %arg1[%c0, %c0_0] : memref<1x648xf32, #tpu.memory_space<vmem>>, vector<1x648xf32>
    %c0_1 = arith.constant 0 : index
    %c109 = arith.constant 109 : index
    %1 = vector.load %arg0[%c0_1, %c109] : memref<8x904xf32, #tpu.memory_space<vmem>>, vector<8x648xf32>
    %c0_2 = arith.constant 0 : index
    %c0_3 = arith.constant 0 : index
    %2 = vector.load %arg11[%c0_2, %c0_3] : memref<72x648xf32, #tpu.memory_space<vmem>>, vector<8x648xf32>
    tpu.vector_store %arg11[%c0_2, %c0_3], %1 {strides = array<i32>} : memref<72x648xf32, #tpu.memory_space<vmem>>, vector<8x648xf32>,
    %c0_4 = arith.constant 0 : index
    %c110 = arith.constant 110 : index
    %3 = vector.load %arg0[%c0_4, %c110] : memref<8x904xf32, #tpu.memory_space<vmem>>, vector<8x648xf32>
    %c8 = arith.constant 8 : index
    %c0_5 = arith.constant 0 : index
    %4 = vector.load %arg11[%c8, %c0_5] : memref<72x648xf32, #tpu.memory_space<vmem>>, vector<8x648xf32>
    tpu.vector_store %arg11[%c8, %c0_5], %3 {strides = array<i32>} : memref<72x648xf32, #tpu.memory_space<vmem>>, vector<8x648xf32>,
    %c0_6 = arith.constant 0 : index
    %c111 = arith.constant 111 : index
    %5 = vector.load %arg0[%c0_6, %c111] : memref<8x904xf32, #tpu.memory_space<vmem>>, vector<8x648xf32>
    %c16 = arith.constant 16 : index
    %c0_7 = arith.constant 0 : index
    %6 = vector.load %arg11[%c16, %c0_7] : memref<72x648xf32, #tpu.memory_space<vmem>>, vector<8x648xf32>
    tpu.vector_store %arg11[%c16, %c0_7], %5 {strides = array<i32>} : memref<72x648xf32, #tpu.memory_space<vmem>>, vector<8x648xf32>,
    %c0_8 = arith.constant 0 : index
    %c127 = arith.constant 127 : index
    %7 = vector.load %arg0[%c0_8, %c127] : memref<8x904xf32, #tpu.memory_space<vmem>>, vector<8x648xf32>
    %c24 = arith.constant 24 : index
    %c0_9 = arith.constant 0 : index
    %8 = vector.load %arg11[%c24, %c0_9] : memref<72x648xf32, #tpu.memory_space<vmem>>, vector<8x648xf32>
    tpu.vector_store %arg11[%c24, %c0_9], %7 {strides = array<i32>} : memref<72x648xf32, #tpu.memory_space<vmem>>, vector<8x648xf32>,
    %c0_10 = arith.constant 0 : index
    %c128 = arith.constant 128 : index
    %9 = vector.load %arg0[%c0_10, %c128] : memref<8x904xf32, #tpu.memory_space<vmem>>, vector<8x648xf32>
    %c32 = arith.constant 32 : index
    %c0_11 = arith.constant 0 : index
    %10 = vector.load %arg11[%c32, %c0_11] : memref<72x648xf32, #tpu.memory_space<vmem>>, vector<8x648xf32>
    tpu.vector_store %arg11[%c32, %c0_11], %9 {strides = array<i32>} : memref<72x648xf32, #tpu.memory_space<vmem>>, vector<8x648xf32>,
    %c0_12 = arith.constant 0 : index
    %c129 = arith.constant 129 : index
    %11 = vector.load %arg0[%c0_12, %c129] : memref<8x904xf32, #tpu.memory_space<vmem>>, vector<8x648xf32>
    %c40 = arith.constant 40 : index
    %c0_13 = arith.constant 0 : index
    %12 = vector.load %arg11[%c40, %c0_13] : memref<72x648xf32, #tpu.memory_space<vmem>>, vector<8x648xf32>
    tpu.vector_store %arg11[%c40, %c0_13], %11 {strides = array<i32>} : memref<72x648xf32, #tpu.memory_space<vmem>>, vector<8x648xf32>,
    %c0_14 = arith.constant 0 : index
    %c145 = arith.constant 145 : index
    %13 = vector.load %arg0[%c0_14, %c145] : memref<8x904xf32, #tpu.memory_space<vmem>>, vector<8x648xf32>
    %c48 = arith.constant 48 : index
    %c0_15 = arith.constant 0 : index
    %14 = vector.load %arg11[%c48, %c0_15] : memref<72x648xf32, #tpu.memory_space<vmem>>, vector<8x648xf32>
    tpu.vector_store %arg11[%c48, %c0_15], %13 {strides = array<i32>} : memref<72x648xf32, #tpu.memory_space<vmem>>, vector<8x648xf32>,
    %c0_16 = arith.constant 0 : index
    %c146 = arith.constant 146 : index
    %15 = vector.load %arg0[%c0_16, %c146] : memref<8x904xf32, #tpu.memory_space<vmem>>, vector<8x648xf32>
    %c56 = arith.constant 56 : index
    %c0_17 = arith.constant 0 : index
    %16 = vector.load %arg11[%c56, %c0_17] : memref<72x648xf32, #tpu.memory_space<vmem>>, vector<8x648xf32>
    tpu.vector_store %arg11[%c56, %c0_17], %15 {strides = array<i32>} : memref<72x648xf32, #tpu.memory_space<vmem>>, vector<8x648xf32>,
    %c0_18 = arith.constant 0 : index
    %c147 = arith.constant 147 : index
    %17 = vector.load %arg0[%c0_18, %c147] : memref<8x904xf32, #tpu.memory_space<vmem>>, vector<8x648xf32>
    %c64 = arith.constant 64 : index
    %c0_19 = arith.constant 0 : index
    %18 = vector.load %arg11[%c64, %c0_19] : memref<72x648xf32, #tpu.memory_space<vmem>>, vector<8x648xf32>
    tpu.vector_store %arg11[%c64, %c0_19], %17 {strides = array<i32>} : memref<72x648xf32, #tpu.memory_space<vmem>>, vector<8x648xf32>,
    %c0_20 = arith.constant 0 : index
    %c0_21 = arith.constant 0 : index
    %19 = vector.load %arg2[%c0_20, %c0_21] : memref<4x72xf32, #tpu.memory_space<vmem>>, vector<4x72xf32>
    %c0_22 = arith.constant 0 : index
    %c0_23 = arith.constant 0 : index
    %20 = vector.load %arg11[%c0_22, %c0_23] : memref<72x648xf32, #tpu.memory_space<vmem>>, vector<72x648xf32>
    %cst = arith.constant dense<0.000000e+00> : vector<4x648xf32>
    %21 = tpu.matmul %19, %20, %cst {dimension_numbers = #tpu.dot_dimension_numbers<[1], [0], [0], [1], [0, 0, 1, 1], [], []>} : vector<4x72xf32>, vector<72x648xf32>, vector<4x648xf32> -> vector<4x648xf32>
    %c0_24 = arith.constant 0 : index
    %c0_25 = arith.constant 0 : index
    %22 = vector.load %arg3[%c0_24, %c0_25] : memref<4x1xf32, #tpu.memory_space<vmem>>, vector<4x1xf32>
    %23 = vector.broadcast %22 : vector<4x1xf32> to vector<4x648xf32>
    %24 = arith.addf %21, %23 : vector<4x648xf32>
    %c0_26 = arith.constant 0 : index
    %c0_27 = arith.constant 0 : index
    %25 = vector.load %arg4[%c0_26, %c0_27] : memref<4x1xf32, #tpu.memory_space<vmem>>, vector<4x1xf32>
    %c0_28 = arith.constant 0 : index
    %c0_29 = arith.constant 0 : index
    %26 = vector.load %arg5[%c0_28, %c0_29] : memref<4x1xf32, #tpu.memory_space<vmem>>, vector<4x1xf32>
    %27 = vector.broadcast %0 : vector<1x648xf32> to vector<4x648xf32>
    %28 = arith.mulf %24, %27 : vector<4x648xf32>
    %cst_30 = arith.constant dense<0.000000e+00> : vector<4xf32>
    %29 = vector.multi_reduction <add>, %28, %cst_30 [1] : vector<4x648xf32> to vector<4xf32>
    %30 = vector.shape_cast %29 : vector<4xf32> to vector<4x1xf32>
    %cst_31 = arith.constant 0.001953125 : f32
    %31 = vector.broadcast %cst_31 : f32 to vector<4x1xf32>
    %32 = arith.mulf %30, %31 : vector<4x1xf32>
    %33 = vector.broadcast %32 : vector<4x1xf32> to vector<4x648xf32>
    %34 = arith.subf %24, %33 : vector<4x648xf32>
    %35 = vector.broadcast %0 : vector<1x648xf32> to vector<4x648xf32>
    %36 = arith.mulf %34, %35 : vector<4x648xf32>
    %37 = arith.mulf %36, %36 : vector<4x648xf32>
    %cst_32 = arith.constant dense<0.000000e+00> : vector<4xf32>
    %38 = vector.multi_reduction <add>, %37, %cst_32 [1] : vector<4x648xf32> to vector<4xf32>
    %39 = vector.shape_cast %38 : vector<4xf32> to vector<4x1xf32>
    %cst_33 = arith.constant 0.001953125 : f32
    %40 = vector.broadcast %cst_33 : f32 to vector<4x1xf32>
    %41 = arith.mulf %39, %40 : vector<4x1xf32>
    %42 = vector.broadcast %32 : vector<4x1xf32> to vector<4x648xf32>
    %43 = arith.subf %24, %42 : vector<4x648xf32>
    %cst_34 = arith.constant 9.99999974E-6 : f32
    %44 = vector.broadcast %cst_34 : f32 to vector<4x1xf32>
    %45 = arith.addf %41, %44 : vector<4x1xf32>
    %46 = math.rsqrt %45 : vector<4x1xf32>
    %47 = vector.broadcast %46 : vector<4x1xf32> to vector<4x648xf32>
    %48 = arith.mulf %43, %47 : vector<4x648xf32>
    %49 = vector.broadcast %25 : vector<4x1xf32> to vector<4x648xf32>
    %50 = arith.mulf %48, %49 : vector<4x648xf32>
    %51 = vector.broadcast %26 : vector<4x1xf32> to vector<4x648xf32>
    %52 = arith.addf %50, %51 : vector<4x648xf32>
    %cst_35 = arith.constant 0.000000e+00 : f32
    %53 = vector.broadcast %cst_35 : f32 to vector<4x648xf32>
    %54 = arith.cmpf ogt, %52, %53 : vector<4x648xf32>
    %cst_36 = arith.constant 0.00999999977 : f32
    %55 = vector.broadcast %cst_36 : f32 to vector<4x648xf32>
    %56 = arith.mulf %55, %52 : vector<4x648xf32>
    %57 = arith.select %54, %52, %56 : vector<4x648xi1>, vector<4x648xf32>
    %58 = vector.broadcast %0 : vector<1x648xf32> to vector<4x648xf32>
    %59 = arith.mulf %57, %58 : vector<4x648xf32>
    %cst_37 = arith.constant 0.000000e+00 : f32
    %60 = vector.broadcast %cst_37 : f32 to vector<4x128xf32>
    %c0_38 = arith.constant 0 : index
    %c0_39 = arith.constant 0 : index
    %61 = vector.load %arg12[%c0_38, %c0_39] : memref<4x904xf32, #tpu.memory_space<vmem>>, vector<4x128xf32>
    tpu.vector_store %arg12[%c0_38, %c0_39], %60 {strides = array<i32>} : memref<4x904xf32, #tpu.memory_space<vmem>>, vector<4x128xf32>,
    %cst_40 = arith.constant 0.000000e+00 : f32
    %62 = vector.broadcast %cst_40 : f32 to vector<4x128xf32>
    %c0_41 = arith.constant 0 : index
    %c776 = arith.constant 776 : index
    %63 = vector.load %arg12[%c0_41, %c776] : memref<4x904xf32, #tpu.memory_space<vmem>>, vector<4x128xf32>
    tpu.vector_store %arg12[%c0_41, %c776], %62 {strides = array<i32>} : memref<4x904xf32, #tpu.memory_space<vmem>>, vector<4x128xf32>,
    %c0_42 = arith.constant 0 : index
    %c128_43 = arith.constant 128 : index
    %64 = vector.load %arg12[%c0_42, %c128_43] : memref<4x904xf32, #tpu.memory_space<vmem>>, vector<4x648xf32>
    tpu.vector_store %arg12[%c0_42, %c128_43], %59 {strides = array<i32>} : memref<4x904xf32, #tpu.memory_space<vmem>>, vector<4x648xf32>,
    %c0_44 = arith.constant 0 : index
    %c109_45 = arith.constant 109 : index
    %65 = vector.load %arg12[%c0_44, %c109_45] : memref<4x904xf32, #tpu.memory_space<vmem>>, vector<4x648xf32>
    %c0_46 = arith.constant 0 : index
    %c0_47 = arith.constant 0 : index
    %66 = vector.load %arg13[%c0_46, %c0_47] : memref<36x648xf32, #tpu.memory_space<vmem>>, vector<4x648xf32>
    tpu.vector_store %arg13[%c0_46, %c0_47], %65 {strides = array<i32>} : memref<36x648xf32, #tpu.memory_space<vmem>>, vector<4x648xf32>,
    %c0_48 = arith.constant 0 : index
    %c110_49 = arith.constant 110 : index
    %67 = vector.load %arg12[%c0_48, %c110_49] : memref<4x904xf32, #tpu.memory_space<vmem>>, vector<4x648xf32>
    %c4 = arith.constant 4 : index
    %c0_50 = arith.constant 0 : index
    %68 = vector.load %arg13[%c4, %c0_50] : memref<36x648xf32, #tpu.memory_space<vmem>>, vector<4x648xf32>
    tpu.vector_store %arg13[%c4, %c0_50], %67 {strides = array<i32>} : memref<36x648xf32, #tpu.memory_space<vmem>>, vector<4x648xf32>,
    %c0_51 = arith.constant 0 : index
    %c111_52 = arith.constant 111 : index
    %69 = vector.load %arg12[%c0_51, %c111_52] : memref<4x904xf32, #tpu.memory_space<vmem>>, vector<4x648xf32>
    %c8_53 = arith.constant 8 : index
    %c0_54 = arith.constant 0 : index
    %70 = vector.load %arg13[%c8_53, %c0_54] : memref<36x648xf32, #tpu.memory_space<vmem>>, vector<4x648xf32>
    tpu.vector_store %arg13[%c8_53, %c0_54], %69 {strides = array<i32>} : memref<36x648xf32, #tpu.memory_space<vmem>>, vector<4x648xf32>,
    %c0_55 = arith.constant 0 : index
    %c127_56 = arith.constant 127 : index
    %71 = vector.load %arg12[%c0_55, %c127_56] : memref<4x904xf32, #tpu.memory_space<vmem>>, vector<4x648xf32>
    %c12 = arith.constant 12 : index
    %c0_57 = arith.constant 0 : index
    %72 = vector.load %arg13[%c12, %c0_57] : memref<36x648xf32, #tpu.memory_space<vmem>>, vector<4x648xf32>
    tpu.vector_store %arg13[%c12, %c0_57], %71 {strides = array<i32>} : memref<36x648xf32, #tpu.memory_space<vmem>>, vector<4x648xf32>,
    %c0_58 = arith.constant 0 : index
    %c128_59 = arith.constant 128 : index
    %73 = vector.load %arg12[%c0_58, %c128_59] : memref<4x904xf32, #tpu.memory_space<vmem>>, vector<4x648xf32>
    %c16_60 = arith.constant 16 : index
    %c0_61 = arith.constant 0 : index
    %74 = vector.load %arg13[%c16_60, %c0_61] : memref<36x648xf32, #tpu.memory_space<vmem>>, vector<4x648xf32>
    tpu.vector_store %arg13[%c16_60, %c0_61], %73 {strides = array<i32>} : memref<36x648xf32, #tpu.memory_space<vmem>>, vector<4x648xf32>,
    %c0_62 = arith.constant 0 : index
    %c129_63 = arith.constant 129 : index
    %75 = vector.load %arg12[%c0_62, %c129_63] : memref<4x904xf32, #tpu.memory_space<vmem>>, vector<4x648xf32>
    %c20 = arith.constant 20 : index
    %c0_64 = arith.constant 0 : index
    %76 = vector.load %arg13[%c20, %c0_64] : memref<36x648xf32, #tpu.memory_space<vmem>>, vector<4x648xf32>
    tpu.vector_store %arg13[%c20, %c0_64], %75 {strides = array<i32>} : memref<36x648xf32, #tpu.memory_space<vmem>>, vector<4x648xf32>,
    %c0_65 = arith.constant 0 : index
    %c145_66 = arith.constant 145 : index
    %77 = vector.load %arg12[%c0_65, %c145_66] : memref<4x904xf32, #tpu.memory_space<vmem>>, vector<4x648xf32>
    %c24_67 = arith.constant 24 : index
    %c0_68 = arith.constant 0 : index
    %78 = vector.load %arg13[%c24_67, %c0_68] : memref<36x648xf32, #tpu.memory_space<vmem>>, vector<4x648xf32>
    tpu.vector_store %arg13[%c24_67, %c0_68], %77 {strides = array<i32>} : memref<36x648xf32, #tpu.memory_space<vmem>>, vector<4x648xf32>,
    %c0_69 = arith.constant 0 : index
    %c146_70 = arith.constant 146 : index
    %79 = vector.load %arg12[%c0_69, %c146_70] : memref<4x904xf32, #tpu.memory_space<vmem>>, vector<4x648xf32>
    %c28 = arith.constant 28 : index
    %c0_71 = arith.constant 0 : index
    %80 = vector.load %arg13[%c28, %c0_71] : memref<36x648xf32, #tpu.memory_space<vmem>>, vector<4x648xf32>
    tpu.vector_store %arg13[%c28, %c0_71], %79 {strides = array<i32>} : memref<36x648xf32, #tpu.memory_space<vmem>>, vector<4x648xf32>,
    %c0_72 = arith.constant 0 : index
    %c147_73 = arith.constant 147 : index
    %81 = vector.load %arg12[%c0_72, %c147_73] : memref<4x904xf32, #tpu.memory_space<vmem>>, vector<4x648xf32>
    %c32_74 = arith.constant 32 : index
    %c0_75 = arith.constant 0 : index
    %82 = vector.load %arg13[%c32_74, %c0_75] : memref<36x648xf32, #tpu.memory_space<vmem>>, vector<4x648xf32>
    tpu.vector_store %arg13[%c32_74, %c0_75], %81 {strides = array<i32>} : memref<36x648xf32, #tpu.memory_space<vmem>>, vector<4x648xf32>,
    %c0_76 = arith.constant 0 : index
    %c0_77 = arith.constant 0 : index
    %83 = vector.load %arg6[%c0_76, %c0_77] : memref<4x36xf32, #tpu.memory_space<vmem>>, vector<4x36xf32>
    %c0_78 = arith.constant 0 : index
    %c0_79 = arith.constant 0 : index
    %84 = vector.load %arg13[%c0_78, %c0_79] : memref<36x648xf32, #tpu.memory_space<vmem>>, vector<36x648xf32>
    %cst_80 = arith.constant dense<0.000000e+00> : vector<4x648xf32>
    %85 = tpu.matmul %83, %84, %cst_80 {dimension_numbers = #tpu.dot_dimension_numbers<[1], [0], [0], [1], [0, 0, 1, 1], [], []>} : vector<4x36xf32>, vector<36x648xf32>, vector<4x648xf32> -> vector<4x648xf32>
    %c0_81 = arith.constant 0 : index
    %c0_82 = arith.constant 0 : index
    %86 = vector.load %arg7[%c0_81, %c0_82] : memref<4x1xf32, #tpu.memory_space<vmem>>, vector<4x1xf32>
    %87 = vector.broadcast %86 : vector<4x1xf32> to vector<4x648xf32>
    %88 = arith.addf %85, %87 : vector<4x648xf32>
    %c0_83 = arith.constant 0 : index
    %c0_84 = arith.constant 0 : index
    %89 = vector.load %arg8[%c0_83, %c0_84] : memref<4x1xf32, #tpu.memory_space<vmem>>, vector<4x1xf32>
    %c0_85 = arith.constant 0 : index
    %c0_86 = arith.constant 0 : index
    %90 = vector.load %arg9[%c0_85, %c0_86] : memref<4x1xf32, #tpu.memory_space<vmem>>, vector<4x1xf32>
    %91 = vector.broadcast %0 : vector<1x648xf32> to vector<4x648xf32>
    %92 = arith.mulf %88, %91 : vector<4x648xf32>
    %cst_87 = arith.constant dense<0.000000e+00> : vector<4xf32>
    %93 = vector.multi_reduction <add>, %92, %cst_87 [1] : vector<4x648xf32> to vector<4xf32>
    %94 = vector.shape_cast %93 : vector<4xf32> to vector<4x1xf32>
    %cst_88 = arith.constant 0.001953125 : f32
    %95 = vector.broadcast %cst_88 : f32 to vector<4x1xf32>
    %96 = arith.mulf %94, %95 : vector<4x1xf32>
    %97 = vector.broadcast %96 : vector<4x1xf32> to vector<4x648xf32>
    %98 = arith.subf %88, %97 : vector<4x648xf32>
    %99 = vector.broadcast %0 : vector<1x648xf32> to vector<4x648xf32>
    %100 = arith.mulf %98, %99 : vector<4x648xf32>
    %101 = arith.mulf %100, %100 : vector<4x648xf32>
    %cst_89 = arith.constant dense<0.000000e+00> : vector<4xf32>
    %102 = vector.multi_reduction <add>, %101, %cst_89 [1] : vector<4x648xf32> to vector<4xf32>
    %103 = vector.shape_cast %102 : vector<4xf32> to vector<4x1xf32>
    %cst_90 = arith.constant 0.001953125 : f32
    %104 = vector.broadcast %cst_90 : f32 to vector<4x1xf32>
    %105 = arith.mulf %103, %104 : vector<4x1xf32>
    %106 = vector.broadcast %96 : vector<4x1xf32> to vector<4x648xf32>
    %107 = arith.subf %88, %106 : vector<4x648xf32>
    %cst_91 = arith.constant 9.99999974E-6 : f32
    %108 = vector.broadcast %cst_91 : f32 to vector<4x1xf32>
    %109 = arith.addf %105, %108 : vector<4x1xf32>
    %110 = math.rsqrt %109 : vector<4x1xf32>
    %111 = vector.broadcast %110 : vector<4x1xf32> to vector<4x648xf32>
    %112 = arith.mulf %107, %111 : vector<4x648xf32>
    %113 = vector.broadcast %89 : vector<4x1xf32> to vector<4x648xf32>
    %114 = arith.mulf %112, %113 : vector<4x648xf32>
    %115 = vector.broadcast %90 : vector<4x1xf32> to vector<4x648xf32>
    %116 = arith.addf %114, %115 : vector<4x648xf32>
    %cst_92 = arith.constant 0.000000e+00 : f32
    %117 = vector.broadcast %cst_92 : f32 to vector<4x648xf32>
    %118 = arith.cmpf ogt, %116, %117 : vector<4x648xf32>
    %cst_93 = arith.constant 0.00999999977 : f32
    %119 = vector.broadcast %cst_93 : f32 to vector<4x648xf32>
    %120 = arith.mulf %119, %116 : vector<4x648xf32>
    %121 = arith.select %118, %116, %120 : vector<4x648xi1>, vector<4x648xf32>
    %c0_94 = arith.constant 0 : index
    %c0_95 = arith.constant 0 : index
    %122 = vector.load %arg10[%c0_94, %c0_95] : memref<4x648xf32, #tpu.memory_space<vmem>>, vector<4x648xf32>
    tpu.vector_store %arg10[%c0_94, %c0_95], %121 {strides = array<i32>} : memref<4x648xf32, #tpu.memory_space<vmem>>, vector<4x648xf32>,
    return
  }
}

</mosaic_0001>

<llo_original>
// kernel: tpu_custom_call.1
$region0: #{tpu_custom_call.1}
  #allocation0 [shape = 'u32[]', space=smem, size = 0x4, offset = 0x4, fixed_abs, tag = 'smem constant byte address 0x4 - core index']
  #allocation1 [shape = 'u32[144,128]{1,0:T(1,128)}', space=vmem, size = 0x12000, scoped, tag = 'internal scratch']
  #allocation2 [shape = 'f32[72,648]{1,0:T(8,128)}', space=vmem, size = 0x36000, scoped, tag = 'scratch operand']
  #allocation3 [shape = 'f32[4,904]{1,0:T(4,128)}', space=vmem, size = 0x4000, scoped, tag = 'scratch operand']
  #allocation4 [shape = 'f32[36,648]{1,0:T(8,128)}', space=vmem, size = 0x1e000, scoped, tag = 'scratch operand']
  %s0 = inlined_call_operand.hbm [shape: f32[8,904], index: 0, kind: input, shape index: {}]
  %s1 = inlined_call_operand.vmem [shape: f32[1,648], index: 1, kind: input, shape index: {}]
  %s2 = inlined_call_operand.vmem [shape: f32[4,72], index: 2, kind: input, shape index: {}]
  %s3 = inlined_call_operand.vmem [shape: f32[4,1], index: 3, kind: input, shape index: {}]
  %s4 = inlined_call_operand.vmem [shape: f32[4,1], index: 4, kind: input, shape index: {}]
  %s5 = inlined_call_operand.vmem [shape: f32[4,1], index: 5, kind: input, shape index: {}]
  %s6 = inlined_call_operand.vmem [shape: f32[4,36], index: 6, kind: input, shape index: {}]
  %s7 = inlined_call_operand.vmem [shape: f32[4,1], index: 7, kind: input, shape index: {}]
  %s8 = inlined_call_operand.vmem [shape: f32[4,1], index: 8, kind: input, shape index: {}]
  %s9 = inlined_call_operand.vmem [shape: f32[4,1], index: 9, kind: input, shape index: {}]
  %s10 = inlined_call_operand.hbm [shape: f32[4,648], index: 10, kind: output, shape index: {}]
  %s11 = sld [smem:[#allocation0]]
  $region54: #{tpu_custom_call.1} parent=0
    _
  %s13 = ssub.s32 1, %s11
  %s14 = scalar_select 0, %s13, %s11
  $region1: #{tpu_custom_call.1} parent=0
    #allocation5 [shape = 'u8[32768]{0}', space=vmem, size = 0x8000, scoped, tag = 'input window, operand 0, single buffered']
    #allocation6 [shape = 's32[1]{0}', space=sflag, size = 0x4, scoped, tag = 'scoped memory for tpu_custom_call.1']
    #allocation7 [shape = 's32[1]{0}', space=sflag, size = 0x4, scoped, tag = 'scoped memory for tpu_custom_call.1']
    #allocation8 [shape = 'u8[12288]{0}', space=vmem, size = 0x3000, scoped, tag = 'output window, operand 0, single buffered']
    %15 = vsyncpa [#allocation6], 0
    %16 = vsyncpa [#allocation7], 0
    // Predicated region
    $region2: #{tpu_custom_call.1} parent=1 // pred_check
      _
    $region3: #{tpu_custom_call.1} parent=1 // pred_check_branch
      %18 = sbr.rel (0) target = $region5
    $region4: #{tpu_custom_call.1} parent=1 // pred_region
      %s20 = ssub.s32 1024, 1024
      %21 = vsyncadd [#allocation6], %s20
      %s23 = sshll.u32 [#allocation5], 4
      %s24 = int_to_ptr.vmem [resolvable:$true] %s23
      %26 = dma.hbm_to_vmem [thread:$0]  %s0, 1024, %s24, [#allocation6]
    $region5: #{tpu_custom_call.1} parent=1 // pred_fallthru
      _
    // Predicated region
    $region6: #{tpu_custom_call.1} parent=1 // pred_check
      _
    $region7: #{tpu_custom_call.1} parent=1 // pred_check_branch
      %28 = sbr.rel (0) target = $region9
    $region8: #{tpu_custom_call.1} parent=1 // pred_region
      _
    $region9: #{tpu_custom_call.1} parent=1 // pred_fallthru
      _
    // Predicated region
    $region10: #{tpu_custom_call.1} parent=1 // pred_check
      _
    $region11: #{tpu_custom_call.1} parent=1 // pred_check_branch
      %30 = sbr.rel (0) target = $region13
    $region12: #{tpu_custom_call.1} parent=1 // pred_region
      _
    $region13: #{tpu_custom_call.1} parent=1 // pred_fallthru
      _
    // Predicated region
    $region14: #{tpu_custom_call.1} parent=1 // pred_check
      _
    $region15: #{tpu_custom_call.1} parent=1 // pred_check_branch
      %32 = sbr.rel (0) target = $region17
    $region16: #{tpu_custom_call.1} parent=1 // pred_region
      _
    $region17: #{tpu_custom_call.1} parent=1 // pred_fallthru
      _
    // Predicated region
    $region18: #{tpu_custom_call.1} parent=1 // pred_check
      _
    $region19: #{tpu_custom_call.1} parent=1 // pred_check_branch
      %34 = sbr.rel (0) target = $region21
    $region20: #{tpu_custom_call.1} parent=1 // pred_region
      _
    $region21: #{tpu_custom_call.1} parent=1 // pred_fallthru
      _
    // Predicated region
    $region22: #{tpu_custom_call.1} parent=1 // pred_check
      _
    $region23: #{tpu_custom_call.1} parent=1 // pred_check_branch
      %36 = sbr.rel (0) target = $region25
    $region24: #{tpu_custom_call.1} parent=1 // pred_region
      _
    $region25: #{tpu_custom_call.1} parent=1 // pred_fallthru
      _
    // Predicated region
    $region26: #{tpu_custom_call.1} parent=1 // pred_check
      _
    $region27: #{tpu_custom_call.1} parent=1 // pred_check_branch
      %38 = sbr.rel (0) target = $region29
    $region28: #{tpu_custom_call.1} parent=1 // pred_region
      _
    $region29: #{tpu_custom_call.1} parent=1 // pred_fallthru
      _
    // Predicated region
    $region30: #{tpu_custom_call.1} parent=1 // pred_check
      _
    $region31: #{tpu_custom_call.1} parent=1 // pred_check_branch
      %40 = sbr.rel (0) target = $region33
    $region32: #{tpu_custom_call.1} parent=1 // pred_region
      _
    $region33: #{tpu_custom_call.1} parent=1 // pred_fallthru
      _
    // Predicated region
    $region34: #{tpu_custom_call.1} parent=1 // pred_check
      _
    $region35: #{tpu_custom_call.1} parent=1 // pred_check_branch
      %42 = sbr.rel (0) target = $region37
    $region36: #{tpu_custom_call.1} parent=1 // pred_region
      _
    $region37: #{tpu_custom_call.1} parent=1 // pred_fallthru
      _
    // Predicated region
    $region38: #{tpu_custom_call.1} parent=1 // pred_check
      _
    $region39: #{tpu_custom_call.1} parent=1 // pred_check_branch
      %44 = sbr.rel (0) target = $region41
    $region40: #{tpu_custom_call.1} parent=1 // pred_region
      _
    $region41: #{tpu_custom_call.1} parent=1 // pred_fallthru
      _
    // Predicated region
    $region42: #{tpu_custom_call.1} parent=1 // pred_check
      _
    $region43: #{tpu_custom_call.1} parent=1 // pred_check_branch
      %46 = sbr.rel (0) target = $region45
    $region44: #{tpu_custom_call.1} parent=1 // pred_region
      %47 = dma.done [#allocation6], 1024
    $region45: #{tpu_custom_call.1} parent=1 // pred_fallthru
      _
    %v48 = vld [vmem:[%s1] sm:$0x3f]
    %v49 = vld [vmem:[#allocation5] sm:$0xff]
    %v50 = vld [vmem:[#allocation5 + $0x8] sm:$0xff]
    %v51 = vld [vmem:[#allocation5 + $0x10] sm:$0xff]
    %v52 = vld [vmem:[#allocation5 + $0x18] sm:$0xff]
    %v53 = vld [vmem:[#allocation5 + $0x20] sm:$0xff]
    %v54 = vld [vmem:[#allocation5 + $0x28] sm:$0xff]
    %61 = vrot.lane.b32.xlu0 %v49, 19
    %v62 = vpop.permute.xlu0 %61
    %63 = vrot.lane.b32.xlu0 %v50, 19
    %v64 = vpop.permute.xlu0 %63
    %65 = vrot.lane.b32.xlu0 %v51, 19
    %v66 = vpop.permute.xlu0 %65
    %67 = vrot.lane.b32.xlu0 %v52, 19
    %v68 = vpop.permute.xlu0 %67
    %69 = vrot.lane.b32.xlu0 %v53, 19
    %v70 = vpop.permute.xlu0 %69
    %71 = vrot.lane.b32.xlu0 %v54, 19
    %v72 = vpop.permute.xlu0 %71
    %vm73 = vcmask 154624
    %v74 = vsel %vm73, %v62, %v64
    %v75 = vsel %vm73, %v64, %v66
    %v76 = vsel %vm73, %v66, %v68
    %v77 = vsel %vm73, %v68, %v70
    %v78 = vsel %vm73, %v70, %v72
    %85 = vst [vmem:[#allocation2] sm:$0xff] %v74
    %86 = vst [vmem:[#allocation2 + $0x8] sm:$0xff] %v75
    %87 = vst [vmem:[#allocation2 + $0x10] sm:$0xff] %v76
    %88 = vst [vmem:[#allocation2 + $0x18] sm:$0xff] %v77
    %89 = vst [vmem:[#allocation2 + $0x20] sm:$0xff] %v78
    %vm90 = vcmask 64512
    %91 = vst.msk [vmem:[#allocation2 + $0x28] sm:$0xff] %vm90, %v72
    %v92 = vld [vmem:[#allocation5] sm:$0xff]
    %v93 = vld [vmem:[#allocation5 + $0x8] sm:$0xff]
    %v94 = vld [vmem:[#allocation5 + $0x10] sm:$0xff]
    %v95 = vld [vmem:[#allocation5 + $0x18] sm:$0xff]
    %v96 = vld [vmem:[#allocation5 + $0x20] sm:$0xff]
    %v97 = vld [vmem:[#allocation5 + $0x28] sm:$0xff]
    %104 = vrot.lane.b32.xlu0 %v92, 18
    %v105 = vpop.permute.xlu0 %104
    %106 = vrot.lane.b32.xlu0 %v93, 18
    %v107 = vpop.permute.xlu0 %106
    %108 = vrot.lane.b32.xlu0 %v94, 18
    %v109 = vpop.permute.xlu0 %108
    %110 = vrot.lane.b32.xlu0 %v95, 18
    %v111 = vpop.permute.xlu0 %110
    %112 = vrot.lane.b32.xlu0 %v96, 18
    %v113 = vpop.permute.xlu0 %112
    %114 = vrot.lane.b32.xlu0 %v97, 18
    %v115 = vpop.permute.xlu0 %114
    %vm116 = vcmask 146432
    %v117 = vsel %vm116, %v105, %v107
    %v118 = vsel %vm116, %v107, %v109
    %v119 = vsel %vm116, %v109, %v111
    %v120 = vsel %vm116, %v111, %v113
    %v121 = vsel %vm116, %v113, %v115
    %128 = vst [vmem:[#allocation2 + $0x30] sm:$0xff] %v117
    %129 = vst [vmem:[#allocation2 + $0x38] sm:$0xff] %v118
    %130 = vst [vmem:[#allocation2 + $0x40] sm:$0xff] %v119
    %131 = vst [vmem:[#allocation2 + $0x48] sm:$0xff] %v120
    %132 = vst [vmem:[#allocation2 + $0x50] sm:$0xff] %v121
    %133 = vst.msk [vmem:[#allocation2 + $0x58] sm:$0xff] %vm90, %v115
    %v134 = vld [vmem:[#allocation5] sm:$0xff]
    %v135 = vld [vmem:[#allocation5 + $0x8] sm:$0xff]
    %v136 = vld [vmem:[#allocation5 + $0x10] sm:$0xff]
    %v137 = vld [vmem:[#allocation5 + $0x18] sm:$0xff]
    %v138 = vld [vmem:[#allocation5 + $0x20] sm:$0xff]
    %v139 = vld [vmem:[#allocation5 + $0x28] sm:$0xff]
    %146 = vrot.lane.b32.xlu0 %v134, 17
    %v147 = vpop.permute.xlu0 %146
    %148 = vrot.lane.b32.xlu0 %v135, 17
    %v149 = vpop.permute.xlu0 %148
    %150 = vrot.lane.b32.xlu0 %v136, 17
    %v151 = vpop.permute.xlu0 %150
    %152 = vrot.lane.b32.xlu0 %v137, 17
    %v153 = vpop.permute.xlu0 %152
    %154 = vrot.lane.b32.xlu0 %v138, 17
    %v155 = vpop.permute.xlu0 %154
    %156 = vrot.lane.b32.xlu0 %v139, 17
    %v157 = vpop.permute.xlu0 %156
    %vm158 = vcmask 138240
    %v159 = vsel %vm158, %v147, %v149
    %v160 = vsel %vm158, %v149, %v151
    %v161 = vsel %vm158, %v151, %v153
    %v162 = vsel %vm158, %v153, %v155
    %v163 = vsel %vm158, %v155, %v157
    %170 = vst [vmem:[#allocation2 + $0x60] sm:$0xff] %v159
    %171 = vst [vmem:[#allocation2 + $0x68] sm:$0xff] %v160
    %172 = vst [vmem:[#allocation2 + $0x70] sm:$0xff] %v161
    %173 = vst [vmem:[#allocation2 + $0x78] sm:$0xff] %v162
    %174 = vst [vmem:[#allocation2 + $0x80] sm:$0xff] %v163
    %175 = vst.msk [vmem:[#allocation2 + $0x88] sm:$0xff] %vm90, %v157
    %v176 = vld [vmem:[#allocation5] sm:$0xff]
    %v177 = vld [vmem:[#allocation5 + $0x8] sm:$0xff]
    %v178 = vld [vmem:[#allocation5 + $0x10] sm:$0xff]
    %v179 = vld [vmem:[#allocation5 + $0x18] sm:$0xff]
    %v180 = vld [vmem:[#allocation5 + $0x20] sm:$0xff]
    %v181 = vld [vmem:[#allocation5 + $0x28] sm:$0xff]
    %v182 = vld [vmem:[#allocation5 + $0x30] sm:$0xff]
    %190 = vrot.lane.b32.xlu0 %v176, 1
    %v191 = vpop.permute.xlu0 %190
    %192 = vrot.lane.b32.xlu0 %v177, 1
    %v193 = vpop.permute.xlu0 %192
    %194 = vrot.lane.b32.xlu0 %v178, 1
    %v195 = vpop.permute.xlu0 %194
    %196 = vrot.lane.b32.xlu0 %v179, 1
    %v197 = vpop.permute.xlu0 %196
    %198 = vrot.lane.b32.xlu0 %v180, 1
    %v199 = vpop.permute.xlu0 %198
    %200 = vrot.lane.b32.xlu0 %v181, 1
    %v201 = vpop.permute.xlu0 %200
    %202 = vrot.lane.b32.xlu0 %v182, 1
    %v203 = vpop.permute.xlu0 %202
    %vm204 = vcmask 7168
    %v205 = vsel %vm204, %v191, %v193
    %v206 = vsel %vm204, %v193, %v195
    %v207 = vsel %vm204, %v195, %v197
    %v208 = vsel %vm204, %v197, %v199
    %v209 = vsel %vm204, %v199, %v201
    %v210 = vsel %vm204, %v201, %v203
    %217 = vst [vmem:[#allocation2 + $0x90] sm:$0xff] %v205
    %218 = vst [vmem:[#allocation2 + $0x98] sm:$0xff] %v206
    %219 = vst [vmem:[#allocation2 + $0xa0] sm:$0xff] %v207
    %220 = vst [vmem:[#allocation2 + $0xa8] sm:$0xff] %v208
    %221 = vst [vmem:[#allocation2 + $0xb0] sm:$0xff] %v209
    %222 = vst.msk [vmem:[#allocation2 + $0xb8] sm:$0xff] %vm90, %v210
    %v223 = vld [vmem:[#allocation5 + $0x8] sm:$0xff]
    %v224 = vld [vmem:[#allocation5 + $0x10] sm:$0xff]
    %v225 = vld [vmem:[#allocation5 + $0x18] sm:$0xff]
    %v226 = vld [vmem:[#allocation5 + $0x20] sm:$0xff]
    %v227 = vld [vmem:[#allocation5 + $0x28] sm:$0xff]
    %v228 = vld [vmem:[#allocation5 + $0x30] sm:$0xff]
    %229 = vst [vmem:[#allocation2 + $0xc0] sm:$0xff] %v223
    %230 = vst [vmem:[#allocation2 + $0xc8] sm:$0xff] %v224
    %231 = vst [vmem:[#allocation2 + $0xd0] sm:$0xff] %v225
    %232 = vst [vmem:[#allocation2 + $0xd8] sm:$0xff] %v226
    %233 = vst [vmem:[#allocation2 + $0xe0] sm:$0xff] %v227
    %234 = vst.msk [vmem:[#allocation2 + $0xe8] sm:$0xff] %vm90, %v228
    %v235 = vld [vmem:[#allocation5 + $0x8] sm:$0xff]
    %v236 = vld [vmem:[#allocation5 + $0x10] sm:$0xff]
    %v237 = vld [vmem:[#allocation5 + $0x18] sm:$0xff]
    %v238 = vld [vmem:[#allocation5 + $0x20] sm:$0xff]
    %v239 = vld [vmem:[#allocation5 + $0x28] sm:$0xff]
    %v240 = vld [vmem:[#allocation5 + $0x30] sm:$0xff]
    %247 = vrot.lane.b32.xlu0 %v235, 127
    %v248 = vpop.permute.xlu0 %247
    %249 = vrot.lane.b32.xlu0 %v236, 127
    %v250 = vpop.permute.xlu0 %249
    %251 = vrot.lane.b32.xlu0 %v237, 127
    %v252 = vpop.permute.xlu0 %251
    %253 = vrot.lane.b32.xlu0 %v238, 127
    %v254 = vpop.permute.xlu0 %253
    %255 = vrot.lane.b32.xlu0 %v239, 127
    %v256 = vpop.permute.xlu0 %255
    %257 = vrot.lane.b32.xlu0 %v240, 127
    %v258 = vpop.permute.xlu0 %257
    %vm259 = vcmask 1039360
    %v260 = vsel %vm259, %v248, %v250
    %v261 = vsel %vm259, %v250, %v252
    %v262 = vsel %vm259, %v252, %v254
    %v263 = vsel %vm259, %v254, %v256
    %v264 = vsel %vm259, %v256, %v258
    %271 = vst [vmem:[#allocation2 + $0xf0] sm:$0xff] %v260
    %272 = vst [vmem:[#allocation2 + $0xf8] sm:$0xff] %v261
    %273 = vst [vmem:[#allocation2 + $0x100] sm:$0xff] %v262
    %274 = vst [vmem:[#allocation2 + $0x108] sm:$0xff] %v263
    %275 = vst [vmem:[#allocation2 + $0x110] sm:$0xff] %v264
    %276 = vst.msk [vmem:[#allocation2 + $0x118] sm:$0xff] %vm90, %v258
    %v277 = vld [vmem:[#allocation5 + $0x8] sm:$0xff]
    %v278 = vld [vmem:[#allocation5 + $0x10] sm:$0xff]
    %v279 = vld [vmem:[#allocation5 + $0x18] sm:$0xff]
    %v280 = vld [vmem:[#allocation5 + $0x20] sm:$0xff]
    %v281 = vld [vmem:[#allocation5 + $0x28] sm:$0xff]
    %v282 = vld [vmem:[#allocation5 + $0x30] sm:$0xff]
    %289 = vrot.lane.b32.xlu0 %v277, 111
    %v290 = vpop.permute.xlu0 %289
    %291 = vrot.lane.b32.xlu0 %v278, 111
    %v292 = vpop.permute.xlu0 %291
    %293 = vrot.lane.b32.xlu0 %v279, 111
    %v294 = vpop.permute.xlu0 %293
    %295 = vrot.lane.b32.xlu0 %v280, 111
    %v296 = vpop.permute.xlu0 %295
    %297 = vrot.lane.b32.xlu0 %v281, 111
    %v298 = vpop.permute.xlu0 %297
    %299 = vrot.lane.b32.xlu0 %v282, 111
    %v300 = vpop.permute.xlu0 %299
    %vm301 = vcmask 908288
    %v302 = vsel %vm301, %v290, %v292
    %v303 = vsel %vm301, %v292, %v294
    %v304 = vsel %vm301, %v294, %v296
    %v305 = vsel %vm301, %v296, %v298
    %v306 = vsel %vm301, %v298, %v300
    %313 = vst [vmem:[#allocation2 + $0x120] sm:$0xff] %v302
    %314 = vst [vmem:[#allocation2 + $0x128] sm:$0xff] %v303
    %315 = vst [vmem:[#allocation2 + $0x130] sm:$0xff] %v304
    %316 = vst [vmem:[#allocation2 + $0x138] sm:$0xff] %v305
    %317 = vst [vmem:[#allocation2 + $0x140] sm:$0xff] %v306
    %318 = vst.msk [vmem:[#allocation2 + $0x148] sm:$0xff] %vm90, %v300
    %v319 = vld [vmem:[#allocation5 + $0x8] sm:$0xff]
    %v320 = vld [vmem:[#allocation5 + $0x10] sm:$0xff]
    %v321 = vld [vmem:[#allocation5 + $0x18] sm:$0xff]
    %v322 = vld [vmem:[#allocation5 + $0x20] sm:$0xff]
    %v323 = vld [vmem:[#allocation5 + $0x28] sm:$0xff]
    %v324 = vld [vmem:[#allocation5 + $0x30] sm:$0xff]
    %331 = vrot.lane.b32.xlu0 %v319, 110
    %v332 = vpop.permute.xlu0 %331
    %333 = vrot.lane.b32.xlu0 %v320, 110
    %v334 = vpop.permute.xlu0 %333
    %335 = vrot.lane.b32.xlu0 %v321, 110
    %v336 = vpop.permute.xlu0 %335
    %337 = vrot.lane.b32.xlu0 %v322, 110
    %v338 = vpop.permute.xlu0 %337
    %339 = vrot.lane.b32.xlu0 %v323, 110
    %v340 = vpop.permute.xlu0 %339
    %341 = vrot.lane.b32.xlu0 %v324, 110
    %v342 = vpop.permute.xlu0 %341
    %vm343 = vcmask 900096
    %v344 = vsel %vm343, %v332, %v334
    %v345 = vsel %vm343, %v334, %v336
    %v346 = vsel %vm343, %v336, %v338
    %v347 = vsel %vm343, %v338, %v340
    %v348 = vsel %vm343, %v340, %v342
    %355 = vst [vmem:[#allocation2 + $0x150] sm:$0xff] %v344
    %356 = vst [vmem:[#allocation2 + $0x158] sm:$0xff] %v345
    %357 = vst [vmem:[#allocation2 + $0x160] sm:$0xff] %v346
    %358 = vst [vmem:[#allocation2 + $0x168] sm:$0xff] %v347
    %359 = vst [vmem:[#allocation2 + $0x170] sm:$0xff] %v348
    %360 = vst.msk [vmem:[#allocation2 + $0x178] sm:$0xff] %vm90, %v342
    %v361 = vld [vmem:[#allocation5 + $0x8] sm:$0xff]
    %v362 = vld [vmem:[#allocation5 + $0x10] sm:$0xff]
    %v363 = vld [vmem:[#allocation5 + $0x18] sm:$0xff]
    %v364 = vld [vmem:[#allocation5 + $0x20] sm:$0xff]
    %v365 = vld [vmem:[#allocation5 + $0x28] sm:$0xff]
    %v366 = vld [vmem:[#allocation5 + $0x30] sm:$0xff]
    %373 = vrot.lane.b32.xlu0 %v361, 109
    %v374 = vpop.permute.xlu0 %373
    %375 = vrot.lane.b32.xlu0 %v362, 109
    %v376 = vpop.permute.xlu0 %375
    %377 = vrot.lane.b32.xlu0 %v363, 109
    %v378 = vpop.permute.xlu0 %377
    %379 = vrot.lane.b32.xlu0 %v364, 109
    %v380 = vpop.permute.xlu0 %379
    %381 = vrot.lane.b32.xlu0 %v365, 109
    %v382 = vpop.permute.xlu0 %381
    %383 = vrot.lane.b32.xlu0 %v366, 109
    %v384 = vpop.permute.xlu0 %383
    %vm385 = vcmask 891904
    %v386 = vsel %vm385, %v374, %v376
    %v387 = vsel %vm385, %v376, %v378
    %v388 = vsel %vm385, %v378, %v380
    %v389 = vsel %vm385, %v380, %v382
    %v390 = vsel %vm385, %v382, %v384
    %397 = vst [vmem:[#allocation2 + $0x180] sm:$0xff] %v386
    %398 = vst [vmem:[#allocation2 + $0x188] sm:$0xff] %v387
    %399 = vst [vmem:[#allocation2 + $0x190] sm:$0xff] %v388
    %400 = vst [vmem:[#allocation2 + $0x198] sm:$0xff] %v389
    %401 = vst [vmem:[#allocation2 + $0x1a0] sm:$0xff] %v390
    %402 = vst.msk [vmem:[#allocation2 + $0x1a8] sm:$0xff] %vm90, %v384
    %v403 = vld [vmem:[%s2] sm:$0xf]
    %v404 = vld [vmem:[#allocation2] sm:$0xff]
    %v405 = vld [vmem:[#allocation2 + $0x8] sm:$0xff]
    %v406 = vld [vmem:[#allocation2 + $0x10] sm:$0xff]
    %v407 = vld [vmem:[#allocation2 + $0x18] sm:$0xff]
    %v408 = vld [vmem:[#allocation2 + $0x20] sm:$0xff]
    %v409 = vld [vmem:[#allocation2 + $0x28] sm:$0xff]
    %v410 = vld [vmem:[#allocation2 + $0x30] sm:$0xff]
    %v411 = vld [vmem:[#allocation2 + $0x38] sm:$0xff]
    %v412 = vld [vmem:[#allocation2 + $0x40] sm:$0xff]
    %v413 = vld [vmem:[#allocation2 + $0x48] sm:$0xff]
    %v414 = vld [vmem:[#allocation2 + $0x50] sm:$0xff]
    %v415 = vld [vmem:[#allocation2 + $0x58] sm:$0xff]
    %v416 = vld [vmem:[#allocation2 + $0x60] sm:$0xff]
    %v417 = vld [vmem:[#allocation2 + $0x68] sm:$0xff]
    %v418 = vld [vmem:[#allocation2 + $0x70] sm:$0xff]
    %v419 = vld [vmem:[#allocation2 + $0x78] sm:$0xff]
    %v420 = vld [vmem:[#allocation2 + $0x80] sm:$0xff]
    %v421 = vld [vmem:[#allocation2 + $0x88] sm:$0xff]
    %v422 = vld [vmem:[#allocation2 + $0x90] sm:$0xff]
    %v423 = vld [vmem:[#allocation2 + $0x98] sm:$0xff]
    %v424 = vld [vmem:[#allocation2 + $0xa0] sm:$0xff]
    %v425 = vld [vmem:[#allocation2 + $0xa8] sm:$0xff]
    %v426 = vld [vmem:[#allocation2 + $0xb0] sm:$0xff]
    %v427 = vld [vmem:[#allocation2 + $0xb8] sm:$0xff]
    %v428 = vld [vmem:[#allocation2 + $0xc0] sm:$0xff]
    %v429 = vld [vmem:[#allocation2 + $0xc8] sm:$0xff]
    %v430 = vld [vmem:[#allocation2 + $0xd0] sm:$0xff]
    %v431 = vld [vmem:[#allocation2 + $0xd8] sm:$0xff]
    %v432 = vld [vmem:[#allocation2 + $0xe0] sm:$0xff]
    %v433 = vld [vmem:[#allocation2 + $0xe8] sm:$0xff]
    %v434 = vld [vmem:[#allocation2 + $0xf0] sm:$0xff]
    %v435 = vld [vmem:[#allocation2 + $0xf8] sm:$0xff]
    %v436 = vld [vmem:[#allocation2 + $0x100] sm:$0xff]
    %v437 = vld [vmem:[#allocation2 + $0x108] sm:$0xff]
    %v438 = vld [vmem:[#allocation2 + $0x110] sm:$0xff]
    %v439 = vld [vmem:[#allocation2 + $0x118] sm:$0xff]
    %v440 = vld [vmem:[#allocation2 + $0x120] sm:$0xff]
    %v441 = vld [vmem:[#allocation2 + $0x128] sm:$0xff]
    %v442 = vld [vmem:[#allocation2 + $0x130] sm:$0xff]
    %v443 = vld [vmem:[#allocation2 + $0x138] sm:$0xff]
    %v444 = vld [vmem:[#allocation2 + $0x140] sm:$0xff]
    %v445 = vld [vmem:[#allocation2 + $0x148] sm:$0xff]
    %v446 = vld [vmem:[#allocation2 + $0x150] sm:$0xff]
    %v447 = vld [vmem:[#allocation2 + $0x158] sm:$0xff]
    %v448 = vld [vmem:[#allocation2 + $0x160] sm:$0xff]
    %v449 = vld [vmem:[#allocation2 + $0x168] sm:$0xff]
    %v450 = vld [vmem:[#allocation2 + $0x170] sm:$0xff]
    %v451 = vld [vmem:[#allocation2 + $0x178] sm:$0xff]
    %v452 = vld [vmem:[#allocation2 + $0x180] sm:$0xff]
    %v453 = vld [vmem:[#allocation2 + $0x188] sm:$0xff]
    %v454 = vld [vmem:[#allocation2 + $0x190] sm:$0xff]
    %v455 = vld [vmem:[#allocation2 + $0x198] sm:$0xff]
    %v456 = vld [vmem:[#allocation2 + $0x1a0] sm:$0xff]
    %v457 = vld [vmem:[#allocation2 + $0x1a8] sm:$0xff]
    %v458 = vld [vmem:[%s3] sm:$0xf]
    %460 = vset.pattern.permute.xlu0 0
    %461 = vperm.xlu0 %460, %v458
    %v462 = vpop.permute.xlu0 %461
    %vm464 = vcmask 588800
    %v466 = vsel %vm464, %v403, 0
    %468 = vmatprep.subr.mxu0 0.0
    %469 = vmatpush1.msra.mxu0 0.0
    %470 = vmatprep.subr.mxu0 0.0
    %471 = vmatpush1.msra.mxu0 0.0
    %472 = vmatprep.subr.mxu0 0.0
    %473 = vmatpush1.msra.mxu0 0.0
    %474 = vmatprep.subr.mxu0 0.0
    %475 = vmatpush1.msra.mxu0 0.0
    %476 = vmatprep.subr.mxu0 0.0
    %477 = vmatpush1.msra.mxu0 0.0
    %478 = vmatprep.subr.mxu0 0.0
    %479 = vmatpush1.msra.mxu0 0.0
    %480 = vmatprep.subr.mxu0 0.0
    %481 = vmatpush1.msra.mxu0 0.0
    %482 = vmatprep.subr.mxu0 %v453
    %483 = vmatpush1.msra.mxu0 %v452
    %484 = vmatprep.subr.mxu0 %v447
    %485 = vmatpush1.msra.mxu0 %v446
    %486 = vmatprep.subr.mxu0 %v441
    %487 = vmatpush1.msra.mxu0 %v440
    %488 = vmatprep.subr.mxu0 %v435
    %489 = vmatpush1.msra.mxu0 %v434
    %490 = vmatprep.subr.mxu0 %v429
    %491 = vmatpush1.msra.mxu0 %v428
    %492 = vmatprep.subr.mxu0 %v423
    %493 = vmatpush1.msra.mxu0 %v422
    %494 = vmatprep.subr.mxu0 %v417
    %495 = vmatpush1.msra.mxu0 %v416
    %496 = vmatprep.subr.mxu0 %v411
    %497 = vmatpush1.msra.mxu0 %v410
    %498 = vmatprep.subr.mxu0 %v405
    %499 = vmatpush1.msra.mxu0 %v404
    %500 = vmatprep.subr.mxu0 0.0
    %501 = vmatpush2.msra.mxu0 0.0
    %502 = vmatprep.subr.mxu0 0.0
    %503 = vmatpush2.msra.mxu0 0.0
    %504 = vmatprep.subr.mxu0 0.0
    %505 = vmatpush2.msra.mxu0 0.0
    %506 = vmatprep.subr.mxu0 0.0
    %507 = vmatpush2.msra.mxu0 0.0
    %508 = vmatprep.subr.mxu0 0.0
    %509 = vmatpush2.msra.mxu0 0.0
    %510 = vmatprep.subr.mxu0 0.0
    %511 = vmatpush2.msra.mxu0 0.0
    %512 = vmatprep.subr.mxu0 0.0
    %513 = vmatpush2.msra.mxu0 0.0
    %514 = vmatprep.subr.mxu0 0.0
    %515 = vmatpush2.msra.mxu0 0.0
    %516 = vmatprep.subr.mxu0 0.0
    %517 = vmatpush2.msra.mxu0 0.0
    %518 = vmatprep.subr.mxu0 0.0
    %519 = vmatpush2.msra.mxu0 0.0
    %520 = vmatprep.subr.mxu0 0.0
    %521 = vmatpush2.msra.mxu0 0.0
    %522 = vmatprep.subr.mxu0 0.0
    %523 = vmatpush2.msra.mxu0 0.0
    %524 = vmatprep.subr.mxu0 0.0
    %525 = vmatpush2.msra.mxu0 0.0
    %526 = vmatprep.subr.mxu0 0.0
    %527 = vmatpush2.msra.mxu0 0.0
    %528 = vmatprep.subr.mxu0 0.0
    %529 = vmatpush2.msra.mxu0 0.0
    %530 = vmatprep.subr.mxu0 0.0
    %531 = vmatpush2.msra.mxu0 0.0
    %532 = vmatprep.mubr.f32.mxu0 0.0
    %533 = vmatmul.mubr.f32.gmra.mxu0 %v466
    %v534 = vpop.f32.mrf.mxu0
    %v535 = vadd.f32 %v462, %v534
    %v536 = vpop.f32.mrf.mxu0
    %v537 = vadd.f32 %v462, %v536
    %538 = vdwg.mxu0
    %539 = vmatprep.subr.mxu0 0.0
    %540 = vmatpush1.msra.mxu0 0.0
    %541 = vmatprep.subr.mxu0 0.0
    %542 = vmatpush1.msra.mxu0 0.0
    %543 = vmatprep.subr.mxu0 0.0
    %544 = vmatpush1.msra.mxu0 0.0
    %545 = vmatprep.subr.mxu0 0.0
    %546 = vmatpush1.msra.mxu0 0.0
    %547 = vmatprep.subr.mxu0 0.0
    %548 = vmatpush1.msra.mxu0 0.0
    %549 = vmatprep.subr.mxu0 0.0
    %550 = vmatpush1.msra.mxu0 0.0
    %551 = vmatprep.subr.mxu0 0.0
    %552 = vmatpush1.msra.mxu0 0.0
    %553 = vmatprep.subr.mxu0 %v455
    %554 = vmatpush1.msra.mxu0 %v454
    %555 = vmatprep.subr.mxu0 %v449
    %556 = vmatpush1.msra.mxu0 %v448
    %557 = vmatprep.subr.mxu0 %v443
    %558 = vmatpush1.msra.mxu0 %v442
    %559 = vmatprep.subr.mxu0 %v437
    %560 = vmatpush1.msra.mxu0 %v436
    %561 = vmatprep.subr.mxu0 %v431
    %562 = vmatpush1.msra.mxu0 %v430
    %563 = vmatprep.subr.mxu0 %v425
    %564 = vmatpush1.msra.mxu0 %v424
    %565 = vmatprep.subr.mxu0 %v419
    %566 = vmatpush1.msra.mxu0 %v418
    %567 = vmatprep.subr.mxu0 %v413
    %568 = vmatpush1.msra.mxu0 %v412
    %569 = vmatprep.subr.mxu0 %v407
    %570 = vmatpush1.msra.mxu0 %v406
    %571 = vmatprep.subr.mxu0 0.0
    %572 = vmatpush2.msra.mxu0 0.0
    %573 = vmatprep.subr.mxu0 0.0
    %574 = vmatpush2.msra.mxu0 0.0
    %575 = vmatprep.subr.mxu0 0.0
    %576 = vmatpush2.msra.mxu0 0.0
    %577 = vmatprep.subr.mxu0 0.0
    %578 = vmatpush2.msra.mxu0 0.0
    %579 = vmatprep.subr.mxu0 0.0
    %580 = vmatpush2.msra.mxu0 0.0
    %581 = vmatprep.subr.mxu0 0.0
    %582 = vmatpush2.msra.mxu0 0.0
    %583 = vmatprep.subr.mxu0 0.0
    %584 = vmatpush2.msra.mxu0 0.0
    %585 = vmatprep.subr.mxu0 0.0
    %586 = vmatpush2.msra.mxu0 0.0
    %587 = vmatprep.subr.mxu0 0.0
    %588 = vmatpush2.msra.mxu0 0.0
    %589 = vmatprep.subr.mxu0 0.0
    %590 = vmatpush2.msra.mxu0 0.0
    %591 = vmatprep.subr.mxu0 0.0
    %592 = vmatpush2.msra.mxu0 0.0
    %593 = vmatprep.subr.mxu0 0.0
    %594 = vmatpush2.msra.mxu0 0.0
    %595 = vmatprep.subr.mxu0 0.0
    %596 = vmatpush2.msra.mxu0 0.0
    %597 = vmatprep.subr.mxu0 0.0
    %598 = vmatpush2.msra.mxu0 0.0
    %599 = vmatprep.subr.mxu0 0.0
    %600 = vmatpush2.msra.mxu0 0.0
    %601 = vmatprep.subr.mxu0 0.0
    %602 = vmatpush2.msra.mxu0 0.0
    %603 = vmatprep.mubr.f32.mxu0 0.0
    %604 = vmatmul.mubr.f32.gmra.mxu0 %v466
    %v605 = vpop.f32.mrf.mxu0
    %v606 = vadd.f32 %v462, %v605
    %v607 = vpop.f32.mrf.mxu0
    %v608 = vadd.f32 %v462, %v607
    %609 = vdwg.mxu0
    %610 = vmatprep.subr.mxu0 0.0
    %611 = vmatpush1.msra.mxu0 0.0
    %612 = vmatprep.subr.mxu0 0.0
    %613 = vmatpush1.msra.mxu0 0.0
    %614 = vmatprep.subr.mxu0 0.0
    %615 = vmatpush1.msra.mxu0 0.0
    %616 = vmatprep.subr.mxu0 0.0
    %617 = vmatpush1.msra.mxu0 0.0
    %618 = vmatprep.subr.mxu0 0.0
    %619 = vmatpush1.msra.mxu0 0.0
    %620 = vmatprep.subr.mxu0 0.0
    %621 = vmatpush1.msra.mxu0 0.0
    %622 = vmatprep.subr.mxu0 0.0
    %623 = vmatpush1.msra.mxu0 0.0
    %624 = vmatprep.subr.mxu0 %v457
    %625 = vmatpush1.msra.mxu0 %v456
    %626 = vmatprep.subr.mxu0 %v451
    %627 = vmatpush1.msra.mxu0 %v450
    %628 = vmatprep.subr.mxu0 %v445
    %629 = vmatpush1.msra.mxu0 %v444
    %630 = vmatprep.subr.mxu0 %v439
    %631 = vmatpush1.msra.mxu0 %v438
    %632 = vmatprep.subr.mxu0 %v433
    %633 = vmatpush1.msra.mxu0 %v432
    %634 = vmatprep.subr.mxu0 %v427
    %635 = vmatpush1.msra.mxu0 %v426
    %636 = vmatprep.subr.mxu0 %v421
    %637 = vmatpush1.msra.mxu0 %v420
    %638 = vmatprep.subr.mxu0 %v415
    %639 = vmatpush1.msra.mxu0 %v414
    %640 = vmatprep.subr.mxu0 %v409
    %641 = vmatpush1.msra.mxu0 %v408
    %642 = vmatprep.subr.mxu0 0.0
    %643 = vmatpush2.msra.mxu0 0.0
    %644 = vmatprep.subr.mxu0 0.0
    %645 = vmatpush2.msra.mxu0 0.0
    %646 = vmatprep.subr.mxu0 0.0
    %647 = vmatpush2.msra.mxu0 0.0
    %648 = vmatprep.subr.mxu0 0.0
    %649 = vmatpush2.msra.mxu0 0.0
    %650 = vmatprep.subr.mxu0 0.0
    %651 = vmatpush2.msra.mxu0 0.0
    %652 = vmatprep.subr.mxu0 0.0
    %653 = vmatpush2.msra.mxu0 0.0
    %654 = vmatprep.subr.mxu0 0.0
    %655 = vmatpush2.msra.mxu0 0.0
    %656 = vmatprep.subr.mxu0 0.0
    %657 = vmatpush2.msra.mxu0 0.0
    %658 = vmatprep.subr.mxu0 0.0
    %659 = vmatpush2.msra.mxu0 0.0
    %660 = vmatprep.subr.mxu0 0.0
    %661 = vmatpush2.msra.mxu0 0.0
    %662 = vmatprep.subr.mxu0 0.0
    %663 = vmatpush2.msra.mxu0 0.0
    %664 = vmatprep.subr.mxu0 0.0
    %665 = vmatpush2.msra.mxu0 0.0
    %666 = vmatprep.subr.mxu0 0.0
    %667 = vmatpush2.msra.mxu0 0.0
    %668 = vmatprep.subr.mxu0 0.0
    %669 = vmatpush2.msra.mxu0 0.0
    %670 = vmatprep.subr.mxu0 0.0
    %671 = vmatpush2.msra.mxu0 0.0
    %672 = vmatprep.subr.mxu0 0.0
    %673 = vmatpush2.msra.mxu0 0.0
    %674 = vmatprep.mubr.f32.mxu0 0.0
    %675 = vmatmul.mubr.f32.gmra.mxu0 %v466
    %v676 = vpop.f32.mrf.mxu0
    %v677 = vadd.f32 %v462, %v676
    %v678 = vpop.f32.mrf.mxu0
    %v679 = vadd.f32 %v462, %v678
    %680 = vdwg.mxu0
    %v681 = vld [vmem:[%s4] sm:$0xf]
    %v682 = vld [vmem:[%s5] sm:$0xf]
    %v684 = vlaneseq
    %v685 = vshrl.u32 %v684, 7
    %v686 = vsub.s32 0, %v685
    %v687 = vrot.slane %v48, %v686
    %v688 = vlaneseq
    %v689 = vshrl.u32 %v688, 7
    %v690 = vsub.s32 1, %v689
    %v691 = vrot.slane %v48, %v690
    %v692 = vlaneseq
    %v693 = vshrl.u32 %v692, 7
    %v694 = vsub.s32 2, %v693
    %v695 = vrot.slane %v48, %v694
    %v696 = vlaneseq
    %v697 = vshrl.u32 %v696, 7
    %v698 = vsub.s32 3, %v697
    %v699 = vrot.slane %v48, %v698
    %v700 = vlaneseq
    %v701 = vshrl.u32 %v700, 7
    %v702 = vsub.s32 4, %v701
    %v703 = vrot.slane %v48, %v702
    %v704 = vlaneseq
    %v705 = vshrl.u32 %v704, 7
    %v706 = vsub.s32 5, %v705
    %v707 = vrot.slane %v48, %v706
    %v714 = vmul.f32 %v535, %v687
    %v715 = vmul.f32 %v537, %v691
    %v716 = vmul.f32 %v606, %v695
    %v717 = vmul.f32 %v608, %v699
    %v718 = vmul.f32 %v677, %v703
    %v719 = vmul.f32 %v679, %v707
    %vm720 = vcmask 1043456
    %v721 = vsel %vm720, %v714, 0.0
    %v722 = vsel %vm720, %v715, 0.0
    %v723 = vadd.f32 %v721, %v722
    %v724 = vsel %vm720, %v716, 0.0
    %v725 = vadd.f32 %v723, %v724
    %v726 = vsel %vm720, %v717, 0.0
    %v727 = vadd.f32 %v725, %v726
    %v728 = vsel %vm720, %v718, 0.0
    %v729 = vadd.f32 %v727, %v728
    %vm730 = vcmask 60416
    %v731 = vsel %vm730, %v719, 0.0
    %v732 = vadd.f32 %v729, %v731
    %733 = vadd.xlane.f32.xlu0 %v732
    %v734 = vpop.xlane.xlu0 %733
    %v735 = vmul.f32 %v734, 0.001953125
    %v736 = vsub.f32 %v535, %v735
    %v737 = vsub.f32 %v537, %v735
    %v738 = vsub.f32 %v606, %v735
    %v739 = vsub.f32 %v608, %v735
    %v740 = vsub.f32 %v677, %v735
    %v741 = vsub.f32 %v679, %v735
    %v742 = vmul.f32 %v736, %v687
    %v743 = vmul.f32 %v737, %v691
    %v744 = vmul.f32 %v738, %v695
    %v745 = vmul.f32 %v739, %v699
    %v746 = vmul.f32 %v740, %v703
    %v747 = vmul.f32 %v741, %v707
    %v748 = vmul.f32 %v742, %v742
    %v749 = vmul.f32 %v743, %v743
    %v750 = vmul.f32 %v744, %v744
    %v751 = vmul.f32 %v745, %v745
    %v752 = vmul.f32 %v746, %v746
    %v753 = vmul.f32 %v747, %v747
    %v754 = vsel %vm720, %v748, 0.0
    %v755 = vsel %vm720, %v749, 0.0
    %v756 = vadd.f32 %v754, %v755
    %v757 = vsel %vm720, %v750, 0.0
    %v758 = vadd.f32 %v756, %v757
    %v759 = vsel %vm720, %v751, 0.0
    %v760 = vadd.f32 %v758, %v759
    %v761 = vsel %vm720, %v752, 0.0
    %v762 = vadd.f32 %v760, %v761
    %v763 = vsel %vm730, %v753, 0.0
    %v764 = vadd.f32 %v762, %v763
    %765 = vadd.xlane.f32.xlu0 %v764
    %v766 = vpop.xlane.xlu0 %765
    %v767 = vmul.f32 %v766, 0.001953125
    %v768 = vadd.f32 %v767, 1e-05
    %v769 = vrsqrt.pop %v768
    %v770 = vmul.f32 %v736, %v769
    %v771 = vmul.f32 %v737, %v769
    %v772 = vmul.f32 %v738, %v769
    %v773 = vmul.f32 %v739, %v769
    %v774 = vmul.f32 %v740, %v769
    %v775 = vmul.f32 %v741, %v769
    %777 = vset.pattern.permute.xlu0 0
    %778 = vperm.xlu0 %777, %v681
    %v779 = vpop.permute.xlu0 %778
    %v781 = vmul.f32 %v770, %v779
    %v782 = vmul.f32 %v771, %v779
    %v783 = vmul.f32 %v772, %v779
    %v784 = vmul.f32 %v773, %v779
    %v785 = vmul.f32 %v774, %v779
    %v786 = vmul.f32 %v775, %v779
    %788 = vset.pattern.permute.xlu0 0
    %789 = vperm.xlu0 %788, %v682
    %v790 = vpop.permute.xlu0 %789
    %v792 = vadd.f32 %v781, %v790
    %v793 = vadd.f32 %v782, %v790
    %v794 = vadd.f32 %v783, %v790
    %v795 = vadd.f32 %v784, %v790
    %v796 = vadd.f32 %v785, %v790
    %v797 = vadd.f32 %v786, %v790
    %vm798 = vcmp.gt.f32.partialorder %v792, 0.0
    %vm799 = vcmp.gt.f32.partialorder %v793, 0.0
    %vm800 = vcmp.gt.f32.partialorder %v794, 0.0
    %vm801 = vcmp.gt.f32.partialorder %v795, 0.0
    %vm802 = vcmp.gt.f32.partialorder %v796, 0.0
    %vm803 = vcmp.gt.f32.partialorder %v797, 0.0
    %v804 = vmul.f32 %v792, 0.01
    %v805 = vmul.f32 %v793, 0.01
    %v806 = vmul.f32 %v794, 0.01
    %v807 = vmul.f32 %v795, 0.01
    %v808 = vmul.f32 %v796, 0.01
    %v809 = vmul.f32 %v797, 0.01
    %v810 = vsel %vm798, %v792, %v804
    %v811 = vsel %vm799, %v793, %v805
    %v812 = vsel %vm800, %v794, %v806
    %v813 = vsel %vm801, %v795, %v807
    %v814 = vsel %vm802, %v796, %v808
    %v815 = vsel %vm803, %v797, %v809
    %v816 = vmul.f32 %v810, %v687
    %v817 = vmul.f32 %v811, %v691
    %v818 = vmul.f32 %v812, %v695
    %v819 = vmul.f32 %v813, %v699
    %v820 = vmul.f32 %v814, %v703
    %v821 = vmul.f32 %v815, %v707
    %822 = vst [vmem:[#allocation3] sm:$0xf] 0.0
    %vm823 = vcmask 1043520
    %vm824 = vcmask 64516
    %vm825 = vmor %vm824, %vm823
    %826 = vst.msk [vmem:[#allocation3 + $0x18] sm:$0xff] %vm825, 0.0
    %v833 = vcombine.low %v816, %v817
    %v834 = vcombine.low %v818, %v819
    %v835 = vcombine.low %v820, %v821
    %839 = vst [vmem:[#allocation3 + $0x4] sm:$0xff] %v833
    %840 = vst [vmem:[#allocation3 + $0xc] sm:$0xff] %v834
    %vm841 = vmor %vm824, %vm720
    %842 = vst.msk [vmem:[#allocation3 + $0x14] sm:$0xff] %vm841, %v835
    %v843 = vld [vmem:[#allocation3] sm:$0xff]
    %v844 = vld [vmem:[#allocation3 + $0x8] sm:$0xff]
    %v845 = vld [vmem:[#allocation3 + $0x10] sm:$0xff]
    %v849 = vcombine.high %v843, %v843
    %v850 = vcombine.high %v844, %v844
    %v851 = vcombine.high %v845, %v845
    %852 = vrot.lane.b32.xlu0 %v843, 19
    %v853 = vpop.permute.xlu0 %852
    %854 = vrot.lane.b32.xlu0 %v849, 19
    %v855 = vpop.permute.xlu0 %854
    %856 = vrot.lane.b32.xlu0 %v844, 19
    %v857 = vpop.permute.xlu0 %856
    %858 = vrot.lane.b32.xlu0 %v850, 19
    %v859 = vpop.permute.xlu0 %858
    %860 = vrot.lane.b32.xlu0 %v845, 19
    %v861 = vpop.permute.xlu0 %860
    %862 = vrot.lane.b32.xlu0 %v851, 19
    %v863 = vpop.permute.xlu0 %862
    %v864 = vsel %vm73, %v853, %v855
    %v865 = vsel %vm73, %v855, %v857
    %v866 = vsel %vm73, %v857, %v859
    %v867 = vsel %vm73, %v859, %v861
    %v868 = vsel %vm73, %v861, %v863
    %875 = vst [vmem:[#allocation4] sm:$0xf] %v864
    %876 = vst [vmem:[#allocation4 + $0x8] sm:$0xf] %v865
    %877 = vst [vmem:[#allocation4 + $0x10] sm:$0xf] %v866
    %878 = vst [vmem:[#allocation4 + $0x18] sm:$0xf] %v867
    %879 = vst [vmem:[#allocation4 + $0x20] sm:$0xf] %v868
    %880 = vst.msk [vmem:[#allocation4 + $0x28] sm:$0xf] %vm730, %v863
    %v881 = vld [vmem:[#allocation3] sm:$0xff]
    %v882 = vld [vmem:[#allocation3 + $0x8] sm:$0xff]
    %v883 = vld [vmem:[#allocation3 + $0x10] sm:$0xff]
    %v887 = vcombine.low %v881, %v881
    %v888 = vcombine.low %v882, %v882
    %v889 = vcombine.low %v883, %v883
    %890 = vrot.lane.b32.xlu0 %v887, 18
    %v891 = vpop.permute.xlu0 %890
    %892 = vrot.lane.b32.xlu0 %v881, 18
    %v893 = vpop.permute.xlu0 %892
    %894 = vrot.lane.b32.xlu0 %v888, 18
    %v895 = vpop.permute.xlu0 %894
    %896 = vrot.lane.b32.xlu0 %v882, 18
    %v897 = vpop.permute.xlu0 %896
    %898 = vrot.lane.b32.xlu0 %v889, 18
    %v899 = vpop.permute.xlu0 %898
    %900 = vrot.lane.b32.xlu0 %v883, 18
    %v901 = vpop.permute.xlu0 %900
    %v902 = vsel %vm116, %v891, %v893
    %v903 = vsel %vm116, %v893, %v895
    %v904 = vsel %vm116, %v895, %v897
    %v905 = vsel %vm116, %v897, %v899
    %v906 = vsel %vm116, %v899, %v901
    %913 = vst [vmem:[#allocation4] sm:$0xf0] %v902
    %914 = vst [vmem:[#allocation4 + $0x8] sm:$0xf0] %v903
    %915 = vst [vmem:[#allocation4 + $0x10] sm:$0xf0] %v904
    %916 = vst [vmem:[#allocation4 + $0x18] sm:$0xf0] %v905
    %917 = vst [vmem:[#allocation4 + $0x20] sm:$0xf0] %v906
    %918 = vst.msk [vmem:[#allocation4 + $0x28] sm:$0xf0] %vm824, %v901
    %v919 = vld [vmem:[#allocation3] sm:$0xff]
    %v920 = vld [vmem:[#allocation3 + $0x8] sm:$0xff]
    %v921 = vld [vmem:[#allocation3 + $0x10] sm:$0xff]
    %v925 = vcombine.high %v919, %v919
    %v926 = vcombine.high %v920, %v920
    %v927 = vcombine.high %v921, %v921
    %928 = vrot.lane.b32.xlu0 %v919, 17
    %v929 = vpop.permute.xlu0 %928
    %930 = vrot.lane.b32.xlu0 %v925, 17
    %v931 = vpop.permute.xlu0 %930
    %932 = vrot.lane.b32.xlu0 %v920, 17
    %v933 = vpop.permute.xlu0 %932
    %934 = vrot.lane.b32.xlu0 %v926, 17
    %v935 = vpop.permute.xlu0 %934
    %936 = vrot.lane.b32.xlu0 %v921, 17
    %v937 = vpop.permute.xlu0 %936
    %938 = vrot.lane.b32.xlu0 %v927, 17
    %v939 = vpop.permute.xlu0 %938
    %v940 = vsel %vm158, %v929, %v931
    %v941 = vsel %vm158, %v931, %v933
    %v942 = vsel %vm158, %v933, %v935
    %v943 = vsel %vm158, %v935, %v937
    %v944 = vsel %vm158, %v937, %v939
    %951 = vst [vmem:[#allocation4 + $0x30] sm:$0xf] %v940
    %952 = vst [vmem:[#allocation4 + $0x38] sm:$0xf] %v941
    %953 = vst [vmem:[#allocation4 + $0x40] sm:$0xf] %v942
    %954 = vst [vmem:[#allocation4 + $0x48] sm:$0xf] %v943
    %955 = vst [vmem:[#allocation4 + $0x50] sm:$0xf] %v944
    %956 = vst.msk [vmem:[#allocation4 + $0x58] sm:$0xf] %vm730, %v939
    %v957 = vld [vmem:[#allocation3] sm:$0xff]
    %v958 = vld [vmem:[#allocation3 + $0x8] sm:$0xff]
    %v959 = vld [vmem:[#allocation3 + $0x10] sm:$0xff]
    %v960 = vld [vmem:[#allocation3 + $0x18] sm:$0xf]
    %v965 = vcombine.low %v957, %v957
    %v966 = vcombine.low %v958, %v958
    %v967 = vcombine.low %v959, %v959
    %v968 = vcombine.low %v960, %v960
    %969 = vrot.lane.b32.xlu0 %v965, 1
    %v970 = vpop.permute.xlu0 %969
    %971 = vrot.lane.b32.xlu0 %v957, 1
    %v972 = vpop.permute.xlu0 %971
    %973 = vrot.lane.b32.xlu0 %v966, 1
    %v974 = vpop.permute.xlu0 %973
    %975 = vrot.lane.b32.xlu0 %v958, 1
    %v976 = vpop.permute.xlu0 %975
    %977 = vrot.lane.b32.xlu0 %v967, 1
    %v978 = vpop.permute.xlu0 %977
    %979 = vrot.lane.b32.xlu0 %v959, 1
    %v980 = vpop.permute.xlu0 %979
    %981 = vrot.lane.b32.xlu0 %v968, 1
    %v982 = vpop.permute.xlu0 %981
    %v983 = vsel %vm204, %v970, %v972
    %v984 = vsel %vm204, %v972, %v974
    %v985 = vsel %vm204, %v974, %v976
    %v986 = vsel %vm204, %v976, %v978
    %v987 = vsel %vm204, %v978, %v980
    %v988 = vsel %vm204, %v980, %v982
    %995 = vst [vmem:[#allocation4 + $0x30] sm:$0xf0] %v983
    %996 = vst [vmem:[#allocation4 + $0x38] sm:$0xf0] %v984
    %997 = vst [vmem:[#allocation4 + $0x40] sm:$0xf0] %v985
    %998 = vst [vmem:[#allocation4 + $0x48] sm:$0xf0] %v986
    %999 = vst [vmem:[#allocation4 + $0x50] sm:$0xf0] %v987
    %1000 = vst.msk [vmem:[#allocation4 + $0x58] sm:$0xf0] %vm824, %v988
    %v1001 = vld [vmem:[#allocation3 + $0x4] sm:$0xff]
    %v1002 = vld [vmem:[#allocation3 + $0xc] sm:$0xff]
    %v1003 = vld [vmem:[#allocation3 + $0x14] sm:$0xff]
    %v1007 = vcombine.high %v1001, %v1001
    %v1008 = vcombine.high %v1002, %v1002
    %v1009 = vcombine.high %v1003, %v1003
    %1013 = vst [vmem:[#allocation4 + $0x60] sm:$0xf] %v1001
    %1014 = vst [vmem:[#allocation4 + $0x68] sm:$0xf] %v1007
    %1015 = vst [vmem:[#allocation4 + $0x70] sm:$0xf] %v1002
    %1016 = vst [vmem:[#allocation4 + $0x78] sm:$0xf] %v1008
    %1017 = vst [vmem:[#allocation4 + $0x80] sm:$0xf] %v1003
    %1018 = vst.msk [vmem:[#allocation4 + $0x88] sm:$0xf] %vm730, %v1009
    %v1019 = vld [vmem:[#allocation3 + $0x4] sm:$0xff]
    %v1020 = vld [vmem:[#allocation3 + $0xc] sm:$0xff]
    %v1021 = vld [vmem:[#allocation3 + $0x14] sm:$0xff]
    %v1025 = vcombine.low %v1019, %v1019
    %v1026 = vcombine.low %v1020, %v1020
    %v1027 = vcombine.low %v1021, %v1021
    %1028 = vrot.lane.b32.xlu0 %v1025, 127
    %v1029 = vpop.permute.xlu0 %1028
    %1030 = vrot.lane.b32.xlu0 %v1019, 127
    %v1031 = vpop.permute.xlu0 %1030
    %1032 = vrot.lane.b32.xlu0 %v1026, 127
    %v1033 = vpop.permute.xlu0 %1032
    %1034 = vrot.lane.b32.xlu0 %v1020, 127
    %v1035 = vpop.permute.xlu0 %1034
    %1036 = vrot.lane.b32.xlu0 %v1027, 127
    %v1037 = vpop.permute.xlu0 %1036
    %1038 = vrot.lane.b32.xlu0 %v1021, 127
    %v1039 = vpop.permute.xlu0 %1038
    %v1040 = vsel %vm259, %v1029, %v1031
    %v1041 = vsel %vm259, %v1031, %v1033
    %v1042 = vsel %vm259, %v1033, %v1035
    %v1043 = vsel %vm259, %v1035, %v1037
    %v1044 = vsel %vm259, %v1037, %v1039
    %1051 = vst [vmem:[#allocation4 + $0x60] sm:$0xf0] %v1040
    %1052 = vst [vmem:[#allocation4 + $0x68] sm:$0xf0] %v1041
    %1053 = vst [vmem:[#allocation4 + $0x70] sm:$0xf0] %v1042
    %1054 = vst [vmem:[#allocation4 + $0x78] sm:$0xf0] %v1043
    %1055 = vst [vmem:[#allocation4 + $0x80] sm:$0xf0] %v1044
    %1056 = vst.msk [vmem:[#allocation4 + $0x88] sm:$0xf0] %vm824, %v1039
    %v1057 = vld [vmem:[#allocation3 + $0x4] sm:$0xff]
    %v1058 = vld [vmem:[#allocation3 + $0xc] sm:$0xff]
    %v1059 = vld [vmem:[#allocation3 + $0x14] sm:$0xff]
    %v1063 = vcombine.high %v1057, %v1057
    %v1064 = vcombine.high %v1058, %v1058
    %v1065 = vcombine.high %v1059, %v1059
    %1066 = vrot.lane.b32.xlu0 %v1057, 111
    %v1067 = vpop.permute.xlu0 %1066
    %1068 = vrot.lane.b32.xlu0 %v1063, 111
    %v1069 = vpop.permute.xlu0 %1068
    %1070 = vrot.lane.b32.xlu0 %v1058, 111
    %v1071 = vpop.permute.xlu0 %1070
    %1072 = vrot.lane.b32.xlu0 %v1064, 111
    %v1073 = vpop.permute.xlu0 %1072
    %1074 = vrot.lane.b32.xlu0 %v1059, 111
    %v1075 = vpop.permute.xlu0 %1074
    %1076 = vrot.lane.b32.xlu0 %v1065, 111
    %v1077 = vpop.permute.xlu0 %1076
    %v1078 = vsel %vm301, %v1067, %v1069
    %v1079 = vsel %vm301, %v1069, %v1071
    %v1080 = vsel %vm301, %v1071, %v1073
    %v1081 = vsel %vm301, %v1073, %v1075
    %v1082 = vsel %vm301, %v1075, %v1077
    %1089 = vst [vmem:[#allocation4 + $0x90] sm:$0xf] %v1078
    %1090 = vst [vmem:[#allocation4 + $0x98] sm:$0xf] %v1079
    %1091 = vst [vmem:[#allocation4 + $0xa0] sm:$0xf] %v1080
    %1092 = vst [vmem:[#allocation4 + $0xa8] sm:$0xf] %v1081
    %1093 = vst [vmem:[#allocation4 + $0xb0] sm:$0xf] %v1082
    %1094 = vst.msk [vmem:[#allocation4 + $0xb8] sm:$0xf] %vm730, %v1077
    %v1095 = vld [vmem:[#allocation3 + $0x4] sm:$0xff]
    %v1096 = vld [vmem:[#allocation3 + $0xc] sm:$0xff]
    %v1097 = vld [vmem:[#allocation3 + $0x14] sm:$0xff]
    %v1101 = vcombine.low %v1095, %v1095
    %v1102 = vcombine.low %v1096, %v1096
    %v1103 = vcombine.low %v1097, %v1097
    %1104 = vrot.lane.b32.xlu0 %v1101, 110
    %v1105 = vpop.permute.xlu0 %1104
    %1106 = vrot.lane.b32.xlu0 %v1095, 110
    %v1107 = vpop.permute.xlu0 %1106
    %1108 = vrot.lane.b32.xlu0 %v1102, 110
    %v1109 = vpop.permute.xlu0 %1108
    %1110 = vrot.lane.b32.xlu0 %v1096, 110
    %v1111 = vpop.permute.xlu0 %1110
    %1112 = vrot.lane.b32.xlu0 %v1103, 110
    %v1113 = vpop.permute.xlu0 %1112
    %1114 = vrot.lane.b32.xlu0 %v1097, 110
    %v1115 = vpop.permute.xlu0 %1114
    %v1116 = vsel %vm343, %v1105, %v1107
    %v1117 = vsel %vm343, %v1107, %v1109
    %v1118 = vsel %vm343, %v1109, %v1111
    %v1119 = vsel %vm343, %v1111, %v1113
    %v1120 = vsel %vm343, %v1113, %v1115
    %1127 = vst [vmem:[#allocation4 + $0x90] sm:$0xf0] %v1116
    %1128 = vst [vmem:[#allocation4 + $0x98] sm:$0xf0] %v1117
    %1129 = vst [vmem:[#allocation4 + $0xa0] sm:$0xf0] %v1118
    %1130 = vst [vmem:[#allocation4 + $0xa8] sm:$0xf0] %v1119
    %1131 = vst [vmem:[#allocation4 + $0xb0] sm:$0xf0] %v1120
    %1132 = vst.msk [vmem:[#allocation4 + $0xb8] sm:$0xf0] %vm824, %v1115
    %v1133 = vld [vmem:[#allocation3 + $0x4] sm:$0xff]
    %v1134 = vld [vmem:[#allocation3 + $0xc] sm:$0xff]
    %v1135 = vld [vmem:[#allocation3 + $0x14] sm:$0xff]
    %v1139 = vcombine.high %v1133, %v1133
    %v1140 = vcombine.high %v1134, %v1134
    %v1141 = vcombine.high %v1135, %v1135
    %1142 = vrot.lane.b32.xlu0 %v1133, 109
    %v1143 = vpop.permute.xlu0 %1142
    %1144 = vrot.lane.b32.xlu0 %v1139, 109
    %v1145 = vpop.permute.xlu0 %1144
    %1146 = vrot.lane.b32.xlu0 %v1134, 109
    %v1147 = vpop.permute.xlu0 %1146
    %1148 = vrot.lane.b32.xlu0 %v1140, 109
    %v1149 = vpop.permute.xlu0 %1148
    %1150 = vrot.lane.b32.xlu0 %v1135, 109
    %v1151 = vpop.permute.xlu0 %1150
    %1152 = vrot.lane.b32.xlu0 %v1141, 109
    %v1153 = vpop.permute.xlu0 %1152
    %v1154 = vsel %vm385, %v1143, %v1145
    %v1155 = vsel %vm385, %v1145, %v1147
    %v1156 = vsel %vm385, %v1147, %v1149
    %v1157 = vsel %vm385, %v1149, %v1151
    %v1158 = vsel %vm385, %v1151, %v1153
    %1165 = vst [vmem:[#allocation4 + $0xc0] sm:$0xf] %v1154
    %1166 = vst [vmem:[#allocation4 + $0xc8] sm:$0xf] %v1155
    %1167 = vst [vmem:[#allocation4 + $0xd0] sm:$0xf] %v1156
    %1168 = vst [vmem:[#allocation4 + $0xd8] sm:$0xf] %v1157
    %1169 = vst [vmem:[#allocation4 + $0xe0] sm:$0xf] %v1158
    %1170 = vst.msk [vmem:[#allocation4 + $0xe8] sm:$0xf] %vm730, %v1153
    %v1171 = vld [vmem:[%s6] sm:$0xf]
    %v1172 = vld [vmem:[#allocation4] sm:$0xff]
    %v1173 = vld [vmem:[#allocation4 + $0x8] sm:$0xff]
    %v1174 = vld [vmem:[#allocation4 + $0x10] sm:$0xff]
    %v1175 = vld [vmem:[#allocation4 + $0x18] sm:$0xff]
    %v1176 = vld [vmem:[#allocation4 + $0x20] sm:$0xff]
    %v1177 = vld [vmem:[#allocation4 + $0x28] sm:$0xff]
    %v1178 = vld [vmem:[#allocation4 + $0x30] sm:$0xff]
    %v1179 = vld [vmem:[#allocation4 + $0x38] sm:$0xff]
    %v1180 = vld [vmem:[#allocation4 + $0x40] sm:$0xff]
    %v1181 = vld [vmem:[#allocation4 + $0x48] sm:$0xff]
    %v1182 = vld [vmem:[#allocation4 + $0x50] sm:$0xff]
    %v1183 = vld [vmem:[#allocation4 + $0x58] sm:$0xff]
    %v1184 = vld [vmem:[#allocation4 + $0x60] sm:$0xff]
    %v1185 = vld [vmem:[#allocation4 + $0x68] sm:$0xff]
    %v1186 = vld [vmem:[#allocation4 + $0x70] sm:$0xff]
    %v1187 = vld [vmem:[#allocation4 + $0x78] sm:$0xff]
    %v1188 = vld [vmem:[#allocation4 + $0x80] sm:$0xff]
    %v1189 = vld [vmem:[#allocation4 + $0x88] sm:$0xff]
    %v1190 = vld [vmem:[#allocation4 + $0x90] sm:$0xff]
    %v1191 = vld [vmem:[#allocation4 + $0x98] sm:$0xff]
    %v1192 = vld [vmem:[#allocation4 + $0xa0] sm:$0xff]
    %v1193 = vld [vmem:[#allocation4 + $0xa8] sm:$0xff]
    %v1194 = vld [vmem:[#allocation4 + $0xb0] sm:$0xff]
    %v1195 = vld [vmem:[#allocation4 + $0xb8] sm:$0xff]
    %v1196 = vld [vmem:[#allocation4 + $0xc0] sm:$0xf]
    %v1197 = vld [vmem:[#allocation4 + $0xc8] sm:$0xf]
    %v1198 = vld [vmem:[#allocation4 + $0xd0] sm:$0xf]
    %v1199 = vld [vmem:[#allocation4 + $0xd8] sm:$0xf]
    %v1200 = vld [vmem:[#allocation4 + $0xe0] sm:$0xf]
    %v1201 = vld [vmem:[#allocation4 + $0xe8] sm:$0xf]
    %v1202 = vld [vmem:[%s7] sm:$0xf]
    %1204 = vset.pattern.permute.xlu0 0
    %1205 = vperm.xlu0 %1204, %v1202
    %v1206 = vpop.permute.xlu0 %1205
    %vm1208 = vcmask 293888
    %v1210 = vsel %vm1208, %v1171, 0
    %v1213 = vsel %vm720, %v1196, 0
    %v1216 = vsel %vm720, %v1197, 0
    %v1219 = vsel %vm720, %v1198, 0
    %v1222 = vsel %vm720, %v1199, 0
    %v1225 = vsel %vm720, %v1200, 0
    %v1228 = vsel %vm720, %v1201, 0
    %1230 = vmatprep.subr.mxu0 0.0
    %1231 = vmatpush1.msra.mxu0 0.0
    %1232 = vmatprep.subr.mxu0 0.0
    %1233 = vmatpush1.msra.mxu0 0.0
    %1234 = vmatprep.subr.mxu0 0.0
    %1235 = vmatpush1.msra.mxu0 0.0
    %1236 = vmatprep.subr.mxu0 0.0
    %1237 = vmatpush1.msra.mxu0 0.0
    %1238 = vmatprep.subr.mxu0 0.0
    %1239 = vmatpush1.msra.mxu0 0.0
    %1240 = vmatprep.subr.mxu0 0.0
    %1241 = vmatpush1.msra.mxu0 0.0
    %1242 = vmatprep.subr.mxu0 0.0
    %1243 = vmatpush1.msra.mxu0 0.0
    %1244 = vmatprep.subr.mxu0 0.0
    %1245 = vmatpush1.msra.mxu0 0.0
    %1246 = vmatprep.subr.mxu0 0.0
    %1247 = vmatpush1.msra.mxu0 0.0
    %1248 = vmatprep.subr.mxu0 0.0
    %1249 = vmatpush1.msra.mxu0 0.0
    %1250 = vmatprep.subr.mxu0 0.0
    %1251 = vmatpush1.msra.mxu0 0.0
    %1252 = vmatprep.subr.mxu0 %v1216
    %1253 = vmatpush1.msra.mxu0 %v1213
    %1254 = vmatprep.subr.mxu0 %v1191
    %1255 = vmatpush1.msra.mxu0 %v1190
    %1256 = vmatprep.subr.mxu0 %v1185
    %1257 = vmatpush1.msra.mxu0 %v1184
    %1258 = vmatprep.subr.mxu0 %v1179
    %1259 = vmatpush1.msra.mxu0 %v1178
    %1260 = vmatprep.subr.mxu0 %v1173
    %1261 = vmatpush1.msra.mxu0 %v1172
    %1262 = vmatprep.subr.mxu0 0.0
    %1263 = vmatpush2.msra.mxu0 0.0
    %1264 = vmatprep.subr.mxu0 0.0
    %1265 = vmatpush2.msra.mxu0 0.0
    %1266 = vmatprep.subr.mxu0 0.0
    %1267 = vmatpush2.msra.mxu0 0.0
    %1268 = vmatprep.subr.mxu0 0.0
    %1269 = vmatpush2.msra.mxu0 0.0
    %1270 = vmatprep.subr.mxu0 0.0
    %1271 = vmatpush2.msra.mxu0 0.0
    %1272 = vmatprep.subr.mxu0 0.0
    %1273 = vmatpush2.msra.mxu0 0.0
    %1274 = vmatprep.subr.mxu0 0.0
    %1275 = vmatpush2.msra.mxu0 0.0
    %1276 = vmatprep.subr.mxu0 0.0
    %1277 = vmatpush2.msra.mxu0 0.0
    %1278 = vmatprep.subr.mxu0 0.0
    %1279 = vmatpush2.msra.mxu0 0.0
    %1280 = vmatprep.subr.mxu0 0.0
    %1281 = vmatpush2.msra.mxu0 0.0
    %1282 = vmatprep.subr.mxu0 0.0
    %1283 = vmatpush2.msra.mxu0 0.0
    %1284 = vmatprep.subr.mxu0 0.0
    %1285 = vmatpush2.msra.mxu0 0.0
    %1286 = vmatprep.subr.mxu0 0.0
    %1287 = vmatpush2.msra.mxu0 0.0
    %1288 = vmatprep.subr.mxu0 0.0
    %1289 = vmatpush2.msra.mxu0 0.0
    %1290 = vmatprep.subr.mxu0 0.0
    %1291 = vmatpush2.msra.mxu0 0.0
    %1292 = vmatprep.subr.mxu0 0.0
    %1293 = vmatpush2.msra.mxu0 0.0
    %1294 = vmatprep.mubr.f32.mxu0 0.0
    %1295 = vmatmul.mubr.f32.gmra.mxu0 %v1210
    %v1296 = vpop.f32.mrf.mxu0
    %v1297 = vadd.f32 %v1206, %v1296
    %v1298 = vpop.f32.mrf.mxu0
    %v1299 = vadd.f32 %v1206, %v1298
    %1300 = vdwg.mxu0
    %1301 = vmatprep.subr.mxu0 0.0
    %1302 = vmatpush1.msra.mxu0 0.0
    %1303 = vmatprep.subr.mxu0 0.0
    %1304 = vmatpush1.msra.mxu0 0.0
    %1305 = vmatprep.subr.mxu0 0.0
    %1306 = vmatpush1.msra.mxu0 0.0
    %1307 = vmatprep.subr.mxu0 0.0
    %1308 = vmatpush1.msra.mxu0 0.0
    %1309 = vmatprep.subr.mxu0 0.0
    %1310 = vmatpush1.msra.mxu0 0.0
    %1311 = vmatprep.subr.mxu0 0.0
    %1312 = vmatpush1.msra.mxu0 0.0
    %1313 = vmatprep.subr.mxu0 0.0
    %1314 = vmatpush1.msra.mxu0 0.0
    %1315 = vmatprep.subr.mxu0 0.0
    %1316 = vmatpush1.msra.mxu0 0.0
    %1317 = vmatprep.subr.mxu0 0.0
    %1318 = vmatpush1.msra.mxu0 0.0
    %1319 = vmatprep.subr.mxu0 0.0
    %1320 = vmatpush1.msra.mxu0 0.0
    %1321 = vmatprep.subr.mxu0 0.0
    %1322 = vmatpush1.msra.mxu0 0.0
    %1323 = vmatprep.subr.mxu0 %v1222
    %1324 = vmatpush1.msra.mxu0 %v1219
    %1325 = vmatprep.subr.mxu0 %v1193
    %1326 = vmatpush1.msra.mxu0 %v1192
    %1327 = vmatprep.subr.mxu0 %v1187
    %1328 = vmatpush1.msra.mxu0 %v1186
    %1329 = vmatprep.subr.mxu0 %v1181
    %1330 = vmatpush1.msra.mxu0 %v1180
    %1331 = vmatprep.subr.mxu0 %v1175
    %1332 = vmatpush1.msra.mxu0 %v1174
    %1333 = vmatprep.subr.mxu0 0.0
    %1334 = vmatpush2.msra.mxu0 0.0
    %1335 = vmatprep.subr.mxu0 0.0
    %1336 = vmatpush2.msra.mxu0 0.0
    %1337 = vmatprep.subr.mxu0 0.0
    %1338 = vmatpush2.msra.mxu0 0.0
    %1339 = vmatprep.subr.mxu0 0.0
    %1340 = vmatpush2.msra.mxu0 0.0
    %1341 = vmatprep.subr.mxu0 0.0
    %1342 = vmatpush2.msra.mxu0 0.0
    %1343 = vmatprep.subr.mxu0 0.0
    %1344 = vmatpush2.msra.mxu0 0.0
    %1345 = vmatprep.subr.mxu0 0.0
    %1346 = vmatpush2.msra.mxu0 0.0
    %1347 = vmatprep.subr.mxu0 0.0
    %1348 = vmatpush2.msra.mxu0 0.0
    %1349 = vmatprep.subr.mxu0 0.0
    %1350 = vmatpush2.msra.mxu0 0.0
    %1351 = vmatprep.subr.mxu0 0.0
    %1352 = vmatpush2.msra.mxu0 0.0
    %1353 = vmatprep.subr.mxu0 0.0
    %1354 = vmatpush2.msra.mxu0 0.0
    %1355 = vmatprep.subr.mxu0 0.0
    %1356 = vmatpush2.msra.mxu0 0.0
    %1357 = vmatprep.subr.mxu0 0.0
    %1358 = vmatpush2.msra.mxu0 0.0
    %1359 = vmatprep.subr.mxu0 0.0
    %1360 = vmatpush2.msra.mxu0 0.0
    %1361 = vmatprep.subr.mxu0 0.0
    %1362 = vmatpush2.msra.mxu0 0.0
    %1363 = vmatprep.subr.mxu0 0.0
    %1364 = vmatpush2.msra.mxu0 0.0
    %1365 = vmatprep.mubr.f32.mxu0 0.0
    %1366 = vmatmul.mubr.f32.gmra.mxu0 %v1210
    %v1367 = vpop.f32.mrf.mxu0
    %v1368 = vadd.f32 %v1206, %v1367
    %v1369 = vpop.f32.mrf.mxu0
    %v1370 = vadd.f32 %v1206, %v1369
    %1371 = vdwg.mxu0
    %1372 = vmatprep.subr.mxu0 0.0
    %1373 = vmatpush1.msra.mxu0 0.0
    %1374 = vmatprep.subr.mxu0 0.0
    %1375 = vmatpush1.msra.mxu0 0.0
    %1376 = vmatprep.subr.mxu0 0.0
    %1377 = vmatpush1.msra.mxu0 0.0
    %1378 = vmatprep.subr.mxu0 0.0
    %1379 = vmatpush1.msra.mxu0 0.0
    %1380 = vmatprep.subr.mxu0 0.0
    %1381 = vmatpush1.msra.mxu0 0.0
    %1382 = vmatprep.subr.mxu0 0.0
    %1383 = vmatpush1.msra.mxu0 0.0
    %1384 = vmatprep.subr.mxu0 0.0
    %1385 = vmatpush1.msra.mxu0 0.0
    %1386 = vmatprep.subr.mxu0 0.0
    %1387 = vmatpush1.msra.mxu0 0.0
    %1388 = vmatprep.subr.mxu0 0.0
    %1389 = vmatpush1.msra.mxu0 0.0
    %1390 = vmatprep.subr.mxu0 0.0
    %1391 = vmatpush1.msra.mxu0 0.0
    %1392 = vmatprep.subr.mxu0 0.0
    %1393 = vmatpush1.msra.mxu0 0.0
    %1394 = vmatprep.subr.mxu0 %v1228
    %1395 = vmatpush1.msra.mxu0 %v1225
    %1396 = vmatprep.subr.mxu0 %v1195
    %1397 = vmatpush1.msra.mxu0 %v1194
    %1398 = vmatprep.subr.mxu0 %v1189
    %1399 = vmatpush1.msra.mxu0 %v1188
    %1400 = vmatprep.subr.mxu0 %v1183
    %1401 = vmatpush1.msra.mxu0 %v1182
    %1402 = vmatprep.subr.mxu0 %v1177
    %1403 = vmatpush1.msra.mxu0 %v1176
    %1404 = vmatprep.subr.mxu0 0.0
    %1405 = vmatpush2.msra.mxu0 0.0
    %1406 = vmatprep.subr.mxu0 0.0
    %1407 = vmatpush2.msra.mxu0 0.0
    %1408 = vmatprep.subr.mxu0 0.0
    %1409 = vmatpush2.msra.mxu0 0.0
    %1410 = vmatprep.subr.mxu0 0.0
    %1411 = vmatpush2.msra.mxu0 0.0
    %1412 = vmatprep.subr.mxu0 0.0
    %1413 = vmatpush2.msra.mxu0 0.0
    %1414 = vmatprep.subr.mxu0 0.0
    %1415 = vmatpush2.msra.mxu0 0.0
    %1416 = vmatprep.subr.mxu0 0.0
    %1417 = vmatpush2.msra.mxu0 0.0
    %1418 = vmatprep.subr.mxu0 0.0
    %1419 = vmatpush2.msra.mxu0 0.0
    %1420 = vmatprep.subr.mxu0 0.0
    %1421 = vmatpush2.msra.mxu0 0.0
    %1422 = vmatprep.subr.mxu0 0.0
    %1423 = vmatpush2.msra.mxu0 0.0
    %1424 = vmatprep.subr.mxu0 0.0
    %1425 = vmatpush2.msra.mxu0 0.0
    %1426 = vmatprep.subr.mxu0 0.0
    %1427 = vmatpush2.msra.mxu0 0.0
    %1428 = vmatprep.subr.mxu0 0.0
    %1429 = vmatpush2.msra.mxu0 0.0
    %1430 = vmatprep.subr.mxu0 0.0
    %1431 = vmatpush2.msra.mxu0 0.0
    %1432 = vmatprep.subr.mxu0 0.0
    %1433 = vmatpush2.msra.mxu0 0.0
    %1434 = vmatprep.subr.mxu0 0.0
    %1435 = vmatpush2.msra.mxu0 0.0
    %1436 = vmatprep.mubr.f32.mxu0 0.0
    %1437 = vmatmul.mubr.f32.gmra.mxu0 %v1210
    %v1438 = vpop.f32.mrf.mxu0
    %v1439 = vadd.f32 %v1206, %v1438
    %v1440 = vpop.f32.mrf.mxu0
    %v1441 = vadd.f32 %v1206, %v1440
    %1442 = vdwg.mxu0
    %v1443 = vld [vmem:[%s8] sm:$0xf]
    %v1444 = vld [vmem:[%s9] sm:$0xf]
    %v1445 = vmul.f32 %v1297, %v687
    %v1446 = vmul.f32 %v1299, %v691
    %v1447 = vmul.f32 %v1368, %v695
    %v1448 = vmul.f32 %v1370, %v699
    %v1449 = vmul.f32 %v1439, %v703
    %v1450 = vmul.f32 %v1441, %v707
    %v1451 = vsel %vm720, %v1445, 0.0
    %v1452 = vsel %vm720, %v1446, 0.0
    %v1453 = vadd.f32 %v1451, %v1452
    %v1454 = vsel %vm720, %v1447, 0.0
    %v1455 = vadd.f32 %v1453, %v1454
    %v1456 = vsel %vm720, %v1448, 0.0
    %v1457 = vadd.f32 %v1455, %v1456
    %v1458 = vsel %vm720, %v1449, 0.0
    %v1459 = vadd.f32 %v1457, %v1458
    %v1460 = vsel %vm730, %v1450, 0.0
    %v1461 = vadd.f32 %v1459, %v1460
    %1462 = vadd.xlane.f32.xlu0 %v1461
    %v1463 = vpop.xlane.xlu0 %1462
    %v1464 = vmul.f32 %v1463, 0.001953125
    %v1465 = vsub.f32 %v1297, %v1464
    %v1466 = vsub.f32 %v1299, %v1464
    %v1467 = vsub.f32 %v1368, %v1464
    %v1468 = vsub.f32 %v1370, %v1464
    %v1469 = vsub.f32 %v1439, %v1464
    %v1470 = vsub.f32 %v1441, %v1464
    %v1471 = vmul.f32 %v1465, %v687
    %v1472 = vmul.f32 %v1466, %v691
    %v1473 = vmul.f32 %v1467, %v695
    %v1474 = vmul.f32 %v1468, %v699
    %v1475 = vmul.f32 %v1469, %v703
    %v1476 = vmul.f32 %v1470, %v707
    %v1477 = vmul.f32 %v1471, %v1471
    %v1478 = vmul.f32 %v1472, %v1472
    %v1479 = vmul.f32 %v1473, %v1473
    %v1480 = vmul.f32 %v1474, %v1474
    %v1481 = vmul.f32 %v1475, %v1475
    %v1482 = vmul.f32 %v1476, %v1476
    %v1483 = vsel %vm720, %v1477, 0.0
    %v1484 = vsel %vm720, %v1478, 0.0
    %v1485 = vadd.f32 %v1483, %v1484
    %v1486 = vsel %vm720, %v1479, 0.0
    %v1487 = vadd.f32 %v1485, %v1486
    %v1488 = vsel %vm720, %v1480, 0.0
    %v1489 = vadd.f32 %v1487, %v1488
    %v1490 = vsel %vm720, %v1481, 0.0
    %v1491 = vadd.f32 %v1489, %v1490
    %v1492 = vsel %vm730, %v1482, 0.0
    %v1493 = vadd.f32 %v1491, %v1492
    %1494 = vadd.xlane.f32.xlu0 %v1493
    %v1495 = vpop.xlane.xlu0 %1494
    %v1496 = vmul.f32 %v1495, 0.001953125
    %v1497 = vadd.f32 %v1496, 1e-05
    %v1498 = vrsqrt.pop %v1497
    %v1499 = vmul.f32 %v1465, %v1498
    %v1500 = vmul.f32 %v1466, %v1498
    %v1501 = vmul.f32 %v1467, %v1498
    %v1502 = vmul.f32 %v1468, %v1498
    %v1503 = vmul.f32 %v1469, %v1498
    %v1504 = vmul.f32 %v1470, %v1498
    %1506 = vset.pattern.permute.xlu0 0
    %1507 = vperm.xlu0 %1506, %v1443
    %v1508 = vpop.permute.xlu0 %1507
    %v1510 = vmul.f32 %v1499, %v1508
    %v1511 = vmul.f32 %v1500, %v1508
    %v1512 = vmul.f32 %v1501, %v1508
    %v1513 = vmul.f32 %v1502, %v1508
    %v1514 = vmul.f32 %v1503, %v1508
    %v1515 = vmul.f32 %v1504, %v1508
    %1517 = vset.pattern.permute.xlu0 0
    %1518 = vperm.xlu0 %1517, %v1444
    %v1519 = vpop.permute.xlu0 %1518
    %v1521 = vadd.f32 %v1510, %v1519
    %v1522 = vadd.f32 %v1511, %v1519
    %v1523 = vadd.f32 %v1512, %v1519
    %v1524 = vadd.f32 %v1513, %v1519
    %v1525 = vadd.f32 %v1514, %v1519
    %v1526 = vadd.f32 %v1515, %v1519
    %vm1527 = vcmp.gt.f32.partialorder %v1521, 0.0
    %vm1528 = vcmp.gt.f32.partialorder %v1522, 0.0
    %vm1529 = vcmp.gt.f32.partialorder %v1523, 0.0
    %vm1530 = vcmp.gt.f32.partialorder %v1524, 0.0
    %vm1531 = vcmp.gt.f32.partialorder %v1525, 0.0
    %vm1532 = vcmp.gt.f32.partialorder %v1526, 0.0
    %v1533 = vmul.f32 %v1521, 0.01
    %v1534 = vmul.f32 %v1522, 0.01
    %v1535 = vmul.f32 %v1523, 0.01
    %v1536 = vmul.f32 %v1524, 0.01
    %v1537 = vmul.f32 %v1525, 0.01
    %v1538 = vmul.f32 %v1526, 0.01
    %v1539 = vsel %vm1527, %v1521, %v1533
    %v1540 = vsel %vm1528, %v1522, %v1534
    %v1541 = vsel %vm1529, %v1523, %v1535
    %v1542 = vsel %vm1530, %v1524, %v1536
    %v1543 = vsel %vm1531, %v1525, %v1537
    %v1544 = vsel %vm1532, %v1526, %v1538
    %v1551 = vcombine.low %v1539, %v1540
    %v1552 = vcombine.low %v1541, %v1542
    %v1553 = vcombine.low %v1543, %v1544
    %1557 = vst [vmem:[#allocation8] sm:$0xff] %v1551
    %1558 = vst [vmem:[#allocation8 + $0x8] sm:$0xff] %v1552
    %1559 = vst.msk [vmem:[#allocation8 + $0x10] sm:$0xff] %vm841, %v1553
    // Predicated region
    $region46: #{tpu_custom_call.1} parent=1 // pred_check
      _
    $region47: #{tpu_custom_call.1} parent=1 // pred_check_branch
      %1561 = sbr.rel (0) target = $region49
    $region48: #{tpu_custom_call.1} parent=1 // pred_region
      %s1563 = ssub.s32 384, 384
      %1564 = vsyncadd [#allocation7], %s1563
      %s1566 = sshll.u32 [#allocation8], 4
      %s1567 = int_to_ptr.vmem [resolvable:$true] %s1566
      %1569 = dma.vmem_to_hbm [thread:$0]  %s1567, 384, %s10, [#allocation7]
    $region49: #{tpu_custom_call.1} parent=1 // pred_fallthru
      _
    // Predicated region
    $region50: #{tpu_custom_call.1} parent=1 // pred_check
      _
    $region51: #{tpu_custom_call.1} parent=1 // pred_check_branch
      %1571 = sbr.rel (0) target = $region53
    $region52: #{tpu_custom_call.1} parent=1 // pred_region
      %1572 = dma.done [#allocation7], 384
    $region53: #{tpu_custom_call.1} parent=1 // pred_fallthru
      _
    %1573 = vsyncpa [#allocation6], 1
    %1574 = vsyncpa [#allocation7], 1

</llo_original>
